<compile_context>
chip_gen: v5e
topology: v5e:2x2
jax: 0.10.0
libtpu: 0.0.40
codegen_flags: <defaults>
</compile_context>

<pallas_src>
import jax
import jax.numpy as jnp
from jax.experimental import pallas as pl
from jax.experimental.pallas import tpu as pltpu


# ---------------------------------------------------------------------------
# In-kernel helpers (operate on values, not refs)
# ---------------------------------------------------------------------------
def _relu(x):
    return jnp.maximum(x, 0.0)


def _dot(a, b):
    return jnp.dot(a, b, preferred_element_type=jnp.float32)


def _residual(x, w1t, b1, w2t, b2):
    """relu(x + relu(relu(x @ W1^T + b1) @ W2^T + b2))"""
    h = _relu(_dot(x, w1t) + b1)
    h = _relu(_dot(h, w2t) + b2)
    return _relu(x + h)


def _hyper_msg(v1, g, v_other, w1t, b1, w2t, b2, w3at, w3bt, b3):
    """relu(cat([relu(v1@W1^T+b1), relu((g@v_other)@W2^T+b2)]) @ W3^T + b3)

    W3 (shape [dim, 2*dim]) applied via its column split:
        cat([a, b]) @ W3^T == a @ W3[:, :dim]^T + b @ W3[:, dim:]^T
    """
    a = _relu(_dot(v1, w1t) + b1)
    b = _relu(_dot(_dot(g, v_other), w2t) + b2)
    return _relu(_dot(a, w3at) + _dot(b, w3bt) + b3)


# ---------------------------------------------------------------------------
# The single fused kernel
# ---------------------------------------------------------------------------
def fused_hyper_mp_kernel(
        # data
        vn_ref, vc_ref, v1n_ref, v1c_ref, gcn_ref, gnc_ref,
        # res1 weights (shared by the v_n and v_c paths)
        r1w1t_ref, r1b1_ref, r1w2t_ref, r1b2_ref,
        # res2 weights (shared by the v_n and v_c paths)
        r2w1t_ref, r2b1_ref, r2w2t_ref, r2b2_ref,
        # node-side message weights
        w1nt_ref, b1n_ref, w2nt_ref, b2n_ref, w3nat_ref, w3nbt_ref, b3n_ref,
        # hyperedge-side message weights
        w1ct_ref, b1c_ref, w2ct_ref, b2c_ref, w3cat_ref, w3cbt_ref, b3c_ref,
        # outputs
        on_ref, oc_ref,
        # scratch: [N+C, dim] stacked node/hyperedge features (VMEM resident)
        vs_ref):
    n = vn_ref.shape[0]
    c = vc_ref.shape[0]

    # -- stage 0: stack v_n / v_c rows into the shared VMEM scratch ----------
    vs_ref[0:n, :] = vn_ref[...]
    vs_ref[n:n + c, :] = vc_ref[...]

    # -- stage 1: res1_n applied to BOTH paths, batched over N+C rows --------
    vs_ref[...] = _residual(vs_ref[...], r1w1t_ref[...], r1b1_ref[...],
                            r1w2t_ref[...], r1b2_ref[...])

    # -- stage 2: node-side hyper message  v_n += msg(v1_n, g_cn @ v_c) ------
    h_n = _hyper_msg(v1n_ref[...], gcn_ref[...], vs_ref[n:n + c, :],
                     w1nt_ref[...], b1n_ref[...], w2nt_ref[...], b2n_ref[...],
                     w3nat_ref[...], w3nbt_ref[...], b3n_ref[...])
    vs_ref[0:n, :] = vs_ref[0:n, :] + h_n

    # -- stage 3: res2_n applied to BOTH paths, batched over N+C rows --------
    vs_ref[...] = _residual(vs_ref[...], r2w1t_ref[...], r2b1_ref[...],
                            r2w2t_ref[...], r2b2_ref[...])
    v_n = vs_ref[0:n, :]
    on_ref[...] = v_n                      # final v_n

    # -- stage 4: hyperedge-side message  v_c += msg(v1_c, g_nc @ v_n) -------
    h_c = _hyper_msg(v1c_ref[...], gnc_ref[...], v_n,
                     w1ct_ref[...], b1c_ref[...], w2ct_ref[...], b2c_ref[...],
                     w3cat_ref[...], w3cbt_ref[...], b3c_ref[...])
    oc_ref[...] = vs_ref[n:n + c, :] + h_c  # final v_c


# ---------------------------------------------------------------------------
# Wrapper: one pallas_call per forward, whole arrays in VMEM, grid=(1,)
# ---------------------------------------------------------------------------
def _full_spec(shape):
    nd = len(shape)
    return pl.BlockSpec(shape, lambda i, _nd=nd: (0,) * _nd)


@jax.jit
def hyper_mp_block(packed, v_n, v_c, v1_n, v1_c, g_nc, g_cn):
    n, dim = v_n.shape
    c = v_c.shape[0]
    args = (v_n, v_c, v1_n, v1_c, g_cn, g_nc) + tuple(packed)
    return pl.pallas_call(
        fused_hyper_mp_kernel,
        out_shape=(jax.ShapeDtypeStruct((n, dim), jnp.float32),
                   jax.ShapeDtypeStruct((c, dim), jnp.float32)),
        grid=(1,),
        in_specs=[_full_spec(a.shape) for a in args],
        out_specs=(_full_spec((n, dim)), _full_spec((c, dim))),
        scratch_shapes=[pltpu.VMEM((n + c, dim), jnp.float32)],
        compiler_params=pltpu.CompilerParams(
            dimension_semantics=("arbitrary",)),
    )(*args)


# ---------------------------------------------------------------------------
# Parameter init (PyTorch-Linear-style uniform) + one-time packing
# ---------------------------------------------------------------------------
def _init_linear(key, out_f, in_f):
    kw, kb = jax.random.split(key)
    bound = 1.0 / (in_f ** 0.5)
    w = jax.random.uniform(kw, (out_f, in_f), jnp.float32, -bound, bound)
    b = jax.random.uniform(kb, (out_f,), jnp.float32, -bound, bound)
    return w, b


def init_params(key, dim):
    names = ["lin1_n", "lin2_n", "lin3_n", "lin1_c", "lin2_c", "lin3_c",
             "res1_n.lin1", "res1_n.lin2", "res2_n.lin1", "res2_n.lin2",
             "res1_c.lin1", "res1_c.lin2", "res2_c.lin1", "res2_c.lin2"]
    keys = jax.random.split(key, len(names))
    params = {}
    for nm, k in zip(names, keys):
        in_f = 2 * dim if nm in ("lin3_n", "lin3_c") else dim
        params[nm] = _init_linear(k, dim, in_f)
    return params


def pack_params(params, dim):
    """Hoisted once at init: transposes, bias reshapes, W3 column splits."""
    def lin_t(name):
        w, b = params[name]
        return w.T, b.reshape(1, -1)

    def lin3_t(name):
        w, b = params[name]                     # w: (dim, 2*dim)
        return w[:, :dim].T, w[:, dim:].T, b.reshape(1, -1)

    r1w1t, r1b1 = lin_t("res1_n.lin1")
    r1w2t, r1b2 = lin_t("res1_n.lin2")
    r2w1t, r2b1 = lin_t("res2_n.lin1")
    r2w2t, r2b2 = lin_t("res2_n.lin2")
    w1nt, b1n = lin_t("lin1_n")
    w2nt, b2n = lin_t("lin2_n")
    w3nat, w3nbt, b3n = lin3_t("lin3_n")
    w1ct, b1c = lin_t("lin1_c")
    w2ct, b2c = lin_t("lin2_c")
    w3cat, w3cbt, b3c = lin3_t("lin3_c")

    return (r1w1t, r1b1, r1w2t, r1b2,
            r2w1t, r2b1, r2w2t, r2b2,
            w1nt, b1n, w2nt, b2n, w3nat, w3nbt, b3n,
            w1ct, b1c, w2ct, b2c, w3cat, w3cbt, b3c)


# ---------------------------------------------------------------------------
# Pure-JAX reference (mirrors the PyTorch module, incl. res1_n/res2_n reuse)
# ---------------------------------------------------------------------------
def _ref_forward(params, v_n, v_c, v1_n, v1_c, g_nc, g_cn):
    def lin(name, x):
        w, b = params[name]
        return x @ w.T + b

    def res(prefix, x):
        h = jax.nn.relu(lin(prefix + ".lin1", x))
        h = jax.nn.relu(lin(prefix + ".lin2", h))
        return jax.nn.relu(x + h)

    v_n = res("res1_n", v_n)
    v_c = res("res1_n", v_c)
    v_n = v_n + jax.nn.relu(lin("lin3_n", jnp.concatenate(
        [jax.nn.relu(lin("lin1_n", v1_n)),
         jax.nn.relu(lin("lin2_n", g_cn @ v_c))], axis=-1)))
    v_n = res("res2_n", v_n)
    v_c = res("res2_n", v_c)
    v_c = v_c + jax.nn.relu(lin("lin3_c", jnp.concatenate(
        [jax.nn.relu(lin("lin1_c", v1_c)),
         jax.nn.relu(lin("lin2_c", g_nc @ v_n))], axis=-1)))
    return v_n, v_c


if __name__ == "__main__":
    dim, N, C = 32, 16, 8
    key = jax.random.PRNGKey(0)
    kp, k1, k2, k3, k4, k5, k6 = jax.random.split(key, 7)

    params = init_params(kp, dim)
    packed = pack_params(params, dim)

    v_n = jax.random.normal(k1, (N, dim), jnp.float32)
    v_c = jax.random.normal(k2, (C, dim), jnp.float32)
    v1_n = jax.random.normal(k3, (N, dim), jnp.float32)
    v1_c = jax.random.normal(k4, (C, dim), jnp.float32)
    g_nc = jax.random.normal(k5, (C, N), jnp.float32)
    g_cn = jax.random.normal(k6, (N, C), jnp.float32)

    out_n, out_c = hyper_mp_block(packed, v_n, v_c, v1_n, v1_c, g_nc, g_cn)
    jax.block_until_ready((out_n, out_c))

    ref_n, ref_c = _ref_forward(params, v_n, v_c, v1_n, v1_c, g_nc, g_cn)
    assert jnp.allclose(out_n, ref_n, atol=1e-4, rtol=1e-4)
    assert jnp.allclose(out_c, ref_c, atol=1e-4, rtol=1e-4)

    print("KERNEL_OK")
</pallas_src>

<mosaic_0001>
module attributes {stable_mosaic.version = 11 : i64} {
  func.func @fused_hyper_mp_kernel(%arg0: i32, %arg1: memref<16x32xf32, #tpu.memory_space<vmem>>, %arg2: memref<8x32xf32, #tpu.memory_space<vmem>>, %arg3: memref<16x32xf32, #tpu.memory_space<vmem>>, %arg4: memref<8x32xf32, #tpu.memory_space<vmem>>, %arg5: memref<16x8xf32, #tpu.memory_space<vmem>>, %arg6: memref<8x16xf32, #tpu.memory_space<vmem>>, %arg7: memref<32x32xf32, #tpu.memory_space<vmem>>, %arg8: memref<1x32xf32, #tpu.memory_space<vmem>>, %arg9: memref<32x32xf32, #tpu.memory_space<vmem>>, %arg10: memref<1x32xf32, #tpu.memory_space<vmem>>, %arg11: memref<32x32xf32, #tpu.memory_space<vmem>>, %arg12: memref<1x32xf32, #tpu.memory_space<vmem>>, %arg13: memref<32x32xf32, #tpu.memory_space<vmem>>, %arg14: memref<1x32xf32, #tpu.memory_space<vmem>>, %arg15: memref<32x32xf32, #tpu.memory_space<vmem>>, %arg16: memref<1x32xf32, #tpu.memory_space<vmem>>, %arg17: memref<32x32xf32, #tpu.memory_space<vmem>>, %arg18: memref<1x32xf32, #tpu.memory_space<vmem>>, %arg19: memref<32x32xf32, #tpu.memory_space<vmem>>, %arg20: memref<32x32xf32, #tpu.memory_space<vmem>>, %arg21: memref<1x32xf32, #tpu.memory_space<vmem>>, %arg22: memref<32x32xf32, #tpu.memory_space<vmem>>, %arg23: memref<1x32xf32, #tpu.memory_space<vmem>>, %arg24: memref<32x32xf32, #tpu.memory_space<vmem>>, %arg25: memref<1x32xf32, #tpu.memory_space<vmem>>, %arg26: memref<32x32xf32, #tpu.memory_space<vmem>>, %arg27: memref<32x32xf32, #tpu.memory_space<vmem>>, %arg28: memref<1x32xf32, #tpu.memory_space<vmem>>, %arg29: memref<16x32xf32, #tpu.memory_space<vmem>>, %arg30: memref<8x32xf32, #tpu.memory_space<vmem>>, %arg31: memref<24x32xf32, #tpu.memory_space<vmem>>) attributes {dimension_semantics = [#tpu.dimension_semantics<arbitrary>], iteration_bounds = array<i64: 1>, scalar_prefetch = 0 : i64, scratch_operands = 1 : i64, tpu.core_type = #tpu.core_type<tc>, window_params = [{pipeline_mode = #tpu.pipeline_mode<synchronous>, transform_indices = @transform_0, window_bounds = array<i64: 16, 32>}, {pipeline_mode = #tpu.pipeline_mode<synchronous>, transform_indices = @transform_1, window_bounds = array<i64: 8, 32>}, {pipeline_mode = #tpu.pipeline_mode<synchronous>, transform_indices = @transform_2, window_bounds = array<i64: 16, 32>}, {pipeline_mode = #tpu.pipeline_mode<synchronous>, transform_indices = @transform_3, window_bounds = array<i64: 8, 32>}, {pipeline_mode = #tpu.pipeline_mode<synchronous>, transform_indices = @transform_4, window_bounds = array<i64: 16, 8>}, {pipeline_mode = #tpu.pipeline_mode<synchronous>, transform_indices = @transform_5, window_bounds = array<i64: 8, 16>}, {pipeline_mode = #tpu.pipeline_mode<synchronous>, transform_indices = @transform_6, window_bounds = array<i64: 32, 32>}, {pipeline_mode = #tpu.pipeline_mode<synchronous>, transform_indices = @transform_7, window_bounds = array<i64: 1, 32>}, {pipeline_mode = #tpu.pipeline_mode<synchronous>, transform_indices = @transform_8, window_bounds = array<i64: 32, 32>}, {pipeline_mode = #tpu.pipeline_mode<synchronous>, transform_indices = @transform_9, window_bounds = array<i64: 1, 32>}, {pipeline_mode = #tpu.pipeline_mode<synchronous>, transform_indices = @transform_10, window_bounds = array<i64: 32, 32>}, {pipeline_mode = #tpu.pipeline_mode<synchronous>, transform_indices = @transform_11, window_bounds = array<i64: 1, 32>}, {pipeline_mode = #tpu.pipeline_mode<synchronous>, transform_indices = @transform_12, window_bounds = array<i64: 32, 32>}, {pipeline_mode = #tpu.pipeline_mode<synchronous>, transform_indices = @transform_13, window_bounds = array<i64: 1, 32>}, {pipeline_mode = #tpu.pipeline_mode<synchronous>, transform_indices = @transform_14, window_bounds = array<i64: 32, 32>}, {pipeline_mode = #tpu.pipeline_mode<synchronous>, transform_indices = @transform_15, window_bounds = array<i64: 1, 32>}, {pipeline_mode = #tpu.pipeline_mode<synchronous>, transform_indices = @transform_16, window_bounds = array<i64: 32, 32>}, {pipeline_mode = #tpu.pipeline_mode<synchronous>, transform_indices = @transform_17, window_bounds = array<i64: 1, 32>}, {pipeline_mode = #tpu.pipeline_mode<synchronous>, transform_indices = @transform_18, window_bounds = array<i64: 32, 32>}, {pipeline_mode = #tpu.pipeline_mode<synchronous>, transform_indices = @transform_19, window_bounds = array<i64: 32, 32>}, {pipeline_mode = #tpu.pipeline_mode<synchronous>, transform_indices = @transform_20, window_bounds = array<i64: 1, 32>}, {pipeline_mode = #tpu.pipeline_mode<synchronous>, transform_indices = @transform_21, window_bounds = array<i64: 32, 32>}, {pipeline_mode = #tpu.pipeline_mode<synchronous>, transform_indices = @transform_22, window_bounds = array<i64: 1, 32>}, {pipeline_mode = #tpu.pipeline_mode<synchronous>, transform_indices = @transform_23, window_bounds = array<i64: 32, 32>}, {pipeline_mode = #tpu.pipeline_mode<synchronous>, transform_indices = @transform_24, window_bounds = array<i64: 1, 32>}, {pipeline_mode = #tpu.pipeline_mode<synchronous>, transform_indices = @transform_25, window_bounds = array<i64: 32, 32>}, {pipeline_mode = #tpu.pipeline_mode<synchronous>, transform_indices = @transform_26, window_bounds = array<i64: 32, 32>}, {pipeline_mode = #tpu.pipeline_mode<synchronous>, transform_indices = @transform_27, window_bounds = array<i64: 1, 32>}, {pipeline_mode = #tpu.pipeline_mode<synchronous>, transform_indices = @transform_28, window_bounds = array<i64: 16, 32>}, {pipeline_mode = #tpu.pipeline_mode<synchronous>, transform_indices = @transform_29, window_bounds = array<i64: 8, 32>}]} {
    %c0 = arith.constant 0 : index
    %c0_0 = arith.constant 0 : index
    %0 = vector.load %arg1[%c0, %c0_0] : memref<16x32xf32, #tpu.memory_space<vmem>>, vector<16x32xf32>
    %c0_1 = arith.constant 0 : index
    %c0_2 = arith.constant 0 : index
    %1 = vector.load %arg31[%c0_1, %c0_2] : memref<24x32xf32, #tpu.memory_space<vmem>>, vector<16x32xf32>
    tpu.vector_store %arg31[%c0_1, %c0_2], %0 {strides = array<i32>} : memref<24x32xf32, #tpu.memory_space<vmem>>, vector<16x32xf32>,
    %c0_3 = arith.constant 0 : index
    %c0_4 = arith.constant 0 : index
    %2 = vector.load %arg2[%c0_3, %c0_4] : memref<8x32xf32, #tpu.memory_space<vmem>>, vector<8x32xf32>
    %c16 = arith.constant 16 : index
    %c0_5 = arith.constant 0 : index
    %3 = vector.load %arg31[%c16, %c0_5] : memref<24x32xf32, #tpu.memory_space<vmem>>, vector<8x32xf32>
    tpu.vector_store %arg31[%c16, %c0_5], %2 {strides = array<i32>} : memref<24x32xf32, #tpu.memory_space<vmem>>, vector<8x32xf32>,
    %c0_6 = arith.constant 0 : index
    %c0_7 = arith.constant 0 : index
    %4 = vector.load %arg31[%c0_6, %c0_7] : memref<24x32xf32, #tpu.memory_space<vmem>>, vector<24x32xf32>
    %c0_8 = arith.constant 0 : index
    %c0_9 = arith.constant 0 : index
    %5 = vector.load %arg7[%c0_8, %c0_9] : memref<32x32xf32, #tpu.memory_space<vmem>>, vector<32x32xf32>
    %c0_10 = arith.constant 0 : index
    %c0_11 = arith.constant 0 : index
    %6 = vector.load %arg8[%c0_10, %c0_11] : memref<1x32xf32, #tpu.memory_space<vmem>>, vector<1x32xf32>
    %c0_12 = arith.constant 0 : index
    %c0_13 = arith.constant 0 : index
    %7 = vector.load %arg9[%c0_12, %c0_13] : memref<32x32xf32, #tpu.memory_space<vmem>>, vector<32x32xf32>
    %c0_14 = arith.constant 0 : index
    %c0_15 = arith.constant 0 : index
    %8 = vector.load %arg10[%c0_14, %c0_15] : memref<1x32xf32, #tpu.memory_space<vmem>>, vector<1x32xf32>
    %cst = arith.constant dense<0.000000e+00> : vector<24x32xf32>
    %9 = tpu.matmul %4, %5, %cst {dimension_numbers = #tpu.dot_dimension_numbers<[1], [0], [0], [1], [0, 0, 1, 1], [], []>} : vector<24x32xf32>, vector<32x32xf32>, vector<24x32xf32> -> vector<24x32xf32>
    %10 = vector.broadcast %6 : vector<1x32xf32> to vector<24x32xf32>
    %11 = arith.addf %9, %10 : vector<24x32xf32>
    %cst_16 = arith.constant 0.000000e+00 : f32
    %12 = vector.broadcast %cst_16 : f32 to vector<24x32xf32>
    %13 = arith.maximumf %11, %12 : vector<24x32xf32>
    %cst_17 = arith.constant dense<0.000000e+00> : vector<24x32xf32>
    %14 = tpu.matmul %13, %7, %cst_17 {dimension_numbers = #tpu.dot_dimension_numbers<[1], [0], [0], [1], [0, 0, 1, 1], [], []>} : vector<24x32xf32>, vector<32x32xf32>, vector<24x32xf32> -> vector<24x32xf32>
    %15 = vector.broadcast %8 : vector<1x32xf32> to vector<24x32xf32>
    %16 = arith.addf %14, %15 : vector<24x32xf32>
    %cst_18 = arith.constant 0.000000e+00 : f32
    %17 = vector.broadcast %cst_18 : f32 to vector<24x32xf32>
    %18 = arith.maximumf %16, %17 : vector<24x32xf32>
    %19 = arith.addf %4, %18 : vector<24x32xf32>
    %cst_19 = arith.constant 0.000000e+00 : f32
    %20 = vector.broadcast %cst_19 : f32 to vector<24x32xf32>
    %21 = arith.maximumf %19, %20 : vector<24x32xf32>
    %c0_20 = arith.constant 0 : index
    %c0_21 = arith.constant 0 : index
    %22 = vector.load %arg31[%c0_20, %c0_21] : memref<24x32xf32, #tpu.memory_space<vmem>>, vector<24x32xf32>
    tpu.vector_store %arg31[%c0_20, %c0_21], %21 {strides = array<i32>} : memref<24x32xf32, #tpu.memory_space<vmem>>, vector<24x32xf32>,
    %c0_22 = arith.constant 0 : index
    %c0_23 = arith.constant 0 : index
    %23 = vector.load %arg3[%c0_22, %c0_23] : memref<16x32xf32, #tpu.memory_space<vmem>>, vector<16x32xf32>
    %c0_24 = arith.constant 0 : index
    %c0_25 = arith.constant 0 : index
    %24 = vector.load %arg5[%c0_24, %c0_25] : memref<16x8xf32, #tpu.memory_space<vmem>>, vector<16x8xf32>
    %c16_26 = arith.constant 16 : index
    %c0_27 = arith.constant 0 : index
    %25 = vector.load %arg31[%c16_26, %c0_27] : memref<24x32xf32, #tpu.memory_space<vmem>>, vector<8x32xf32>
    %c0_28 = arith.constant 0 : index
    %c0_29 = arith.constant 0 : index
    %26 = vector.load %arg15[%c0_28, %c0_29] : memref<32x32xf32, #tpu.memory_space<vmem>>, vector<32x32xf32>
    %c0_30 = arith.constant 0 : index
    %c0_31 = arith.constant 0 : index
    %27 = vector.load %arg16[%c0_30, %c0_31] : memref<1x32xf32, #tpu.memory_space<vmem>>, vector<1x32xf32>
    %c0_32 = arith.constant 0 : index
    %c0_33 = arith.constant 0 : index
    %28 = vector.load %arg17[%c0_32, %c0_33] : memref<32x32xf32, #tpu.memory_space<vmem>>, vector<32x32xf32>
    %c0_34 = arith.constant 0 : index
    %c0_35 = arith.constant 0 : index
    %29 = vector.load %arg18[%c0_34, %c0_35] : memref<1x32xf32, #tpu.memory_space<vmem>>, vector<1x32xf32>
    %c0_36 = arith.constant 0 : index
    %c0_37 = arith.constant 0 : index
    %30 = vector.load %arg19[%c0_36, %c0_37] : memref<32x32xf32, #tpu.memory_space<vmem>>, vector<32x32xf32>
    %c0_38 = arith.constant 0 : index
    %c0_39 = arith.constant 0 : index
    %31 = vector.load %arg20[%c0_38, %c0_39] : memref<32x32xf32, #tpu.memory_space<vmem>>, vector<32x32xf32>
    %c0_40 = arith.constant 0 : index
    %c0_41 = arith.constant 0 : index
    %32 = vector.load %arg21[%c0_40, %c0_41] : memref<1x32xf32, #tpu.memory_space<vmem>>, vector<1x32xf32>
    %cst_42 = arith.constant dense<0.000000e+00> : vector<16x32xf32>
    %33 = tpu.matmul %23, %26, %cst_42 {dimension_numbers = #tpu.dot_dimension_numbers<[1], [0], [0], [1], [0, 0, 1, 1], [], []>} : vector<16x32xf32>, vector<32x32xf32>, vector<16x32xf32> -> vector<16x32xf32>
    %34 = vector.broadcast %27 : vector<1x32xf32> to vector<16x32xf32>
    %35 = arith.addf %33, %34 : vector<16x32xf32>
    %cst_43 = arith.constant 0.000000e+00 : f32
    %36 = vector.broadcast %cst_43 : f32 to vector<16x32xf32>
    %37 = arith.maximumf %35, %36 : vector<16x32xf32>
    %cst_44 = arith.constant dense<0.000000e+00> : vector<16x32xf32>
    %38 = tpu.matmul %24, %25, %cst_44 {dimension_numbers = #tpu.dot_dimension_numbers<[1], [0], [0], [1], [0, 0, 1, 1], [], []>} : vector<16x8xf32>, vector<8x32xf32>, vector<16x32xf32> -> vector<16x32xf32>
    %cst_45 = arith.constant dense<0.000000e+00> : vector<16x32xf32>
    %39 = tpu.matmul %38, %28, %cst_45 {dimension_numbers = #tpu.dot_dimension_numbers<[1], [0], [0], [1], [0, 0, 1, 1], [], []>} : vector<16x32xf32>, vector<32x32xf32>, vector<16x32xf32> -> vector<16x32xf32>
    %40 = vector.broadcast %29 : vector<1x32xf32> to vector<16x32xf32>
    %41 = arith.addf %39, %40 : vector<16x32xf32>
    %cst_46 = arith.constant 0.000000e+00 : f32
    %42 = vector.broadcast %cst_46 : f32 to vector<16x32xf32>
    %43 = arith.maximumf %41, %42 : vector<16x32xf32>
    %cst_47 = arith.constant dense<0.000000e+00> : vector<16x32xf32>
    %44 = tpu.matmul %37, %30, %cst_47 {dimension_numbers = #tpu.dot_dimension_numbers<[1], [0], [0], [1], [0, 0, 1, 1], [], []>} : vector<16x32xf32>, vector<32x32xf32>, vector<16x32xf32> -> vector<16x32xf32>
    %cst_48 = arith.constant dense<0.000000e+00> : vector<16x32xf32>
    %45 = tpu.matmul %43, %31, %cst_48 {dimension_numbers = #tpu.dot_dimension_numbers<[1], [0], [0], [1], [0, 0, 1, 1], [], []>} : vector<16x32xf32>, vector<32x32xf32>, vector<16x32xf32> -> vector<16x32xf32>
    %46 = arith.addf %44, %45 : vector<16x32xf32>
    %47 = vector.broadcast %32 : vector<1x32xf32> to vector<16x32xf32>
    %48 = arith.addf %46, %47 : vector<16x32xf32>
    %cst_49 = arith.constant 0.000000e+00 : f32
    %49 = vector.broadcast %cst_49 : f32 to vector<16x32xf32>
    %50 = arith.maximumf %48, %49 : vector<16x32xf32>
    %c0_50 = arith.constant 0 : index
    %c0_51 = arith.constant 0 : index
    %51 = vector.load %arg31[%c0_50, %c0_51] : memref<24x32xf32, #tpu.memory_space<vmem>>, vector<16x32xf32>
    %52 = arith.addf %51, %50 : vector<16x32xf32>
    %c0_52 = arith.constant 0 : index
    %c0_53 = arith.constant 0 : index
    %53 = vector.load %arg31[%c0_52, %c0_53] : memref<24x32xf32, #tpu.memory_space<vmem>>, vector<16x32xf32>
    tpu.vector_store %arg31[%c0_52, %c0_53], %52 {strides = array<i32>} : memref<24x32xf32, #tpu.memory_space<vmem>>, vector<16x32xf32>,
    %c0_54 = arith.constant 0 : index
    %c0_55 = arith.constant 0 : index
    %54 = vector.load %arg31[%c0_54, %c0_55] : memref<24x32xf32, #tpu.memory_space<vmem>>, vector<24x32xf32>
    %c0_56 = arith.constant 0 : index
    %c0_57 = arith.constant 0 : index
    %55 = vector.load %arg11[%c0_56, %c0_57] : memref<32x32xf32, #tpu.memory_space<vmem>>, vector<32x32xf32>
    %c0_58 = arith.constant 0 : index
    %c0_59 = arith.constant 0 : index
    %56 = vector.load %arg12[%c0_58, %c0_59] : memref<1x32xf32, #tpu.memory_space<vmem>>, vector<1x32xf32>
    %c0_60 = arith.constant 0 : index
    %c0_61 = arith.constant 0 : index
    %57 = vector.load %arg13[%c0_60, %c0_61] : memref<32x32xf32, #tpu.memory_space<vmem>>, vector<32x32xf32>
    %c0_62 = arith.constant 0 : index
    %c0_63 = arith.constant 0 : index
    %58 = vector.load %arg14[%c0_62, %c0_63] : memref<1x32xf32, #tpu.memory_space<vmem>>, vector<1x32xf32>
    %cst_64 = arith.constant dense<0.000000e+00> : vector<24x32xf32>
    %59 = tpu.matmul %54, %55, %cst_64 {dimension_numbers = #tpu.dot_dimension_numbers<[1], [0], [0], [1], [0, 0, 1, 1], [], []>} : vector<24x32xf32>, vector<32x32xf32>, vector<24x32xf32> -> vector<24x32xf32>
    %60 = vector.broadcast %56 : vector<1x32xf32> to vector<24x32xf32>
    %61 = arith.addf %59, %60 : vector<24x32xf32>
    %cst_65 = arith.constant 0.000000e+00 : f32
    %62 = vector.broadcast %cst_65 : f32 to vector<24x32xf32>
    %63 = arith.maximumf %61, %62 : vector<24x32xf32>
    %cst_66 = arith.constant dense<0.000000e+00> : vector<24x32xf32>
    %64 = tpu.matmul %63, %57, %cst_66 {dimension_numbers = #tpu.dot_dimension_numbers<[1], [0], [0], [1], [0, 0, 1, 1], [], []>} : vector<24x32xf32>, vector<32x32xf32>, vector<24x32xf32> -> vector<24x32xf32>
    %65 = vector.broadcast %58 : vector<1x32xf32> to vector<24x32xf32>
    %66 = arith.addf %64, %65 : vector<24x32xf32>
    %cst_67 = arith.constant 0.000000e+00 : f32
    %67 = vector.broadcast %cst_67 : f32 to vector<24x32xf32>
    %68 = arith.maximumf %66, %67 : vector<24x32xf32>
    %69 = arith.addf %54, %68 : vector<24x32xf32>
    %cst_68 = arith.constant 0.000000e+00 : f32
    %70 = vector.broadcast %cst_68 : f32 to vector<24x32xf32>
    %71 = arith.maximumf %69, %70 : vector<24x32xf32>
    %c0_69 = arith.constant 0 : index
    %c0_70 = arith.constant 0 : index
    %72 = vector.load %arg31[%c0_69, %c0_70] : memref<24x32xf32, #tpu.memory_space<vmem>>, vector<24x32xf32>
    tpu.vector_store %arg31[%c0_69, %c0_70], %71 {strides = array<i32>} : memref<24x32xf32, #tpu.memory_space<vmem>>, vector<24x32xf32>,
    %c0_71 = arith.constant 0 : index
    %c0_72 = arith.constant 0 : index
    %73 = vector.load %arg31[%c0_71, %c0_72] : memref<24x32xf32, #tpu.memory_space<vmem>>, vector<16x32xf32>
    %c0_73 = arith.constant 0 : index
    %c0_74 = arith.constant 0 : index
    %74 = vector.load %arg29[%c0_73, %c0_74] : memref<16x32xf32, #tpu.memory_space<vmem>>, vector<16x32xf32>
    tpu.vector_store %arg29[%c0_73, %c0_74], %73 {strides = array<i32>} : memref<16x32xf32, #tpu.memory_space<vmem>>, vector<16x32xf32>,
    %c0_75 = arith.constant 0 : index
    %c0_76 = arith.constant 0 : index
    %75 = vector.load %arg4[%c0_75, %c0_76] : memref<8x32xf32, #tpu.memory_space<vmem>>, vector<8x32xf32>
    %c0_77 = arith.constant 0 : index
    %c0_78 = arith.constant 0 : index
    %76 = vector.load %arg6[%c0_77, %c0_78] : memref<8x16xf32, #tpu.memory_space<vmem>>, vector<8x16xf32>
    %c0_79 = arith.constant 0 : index
    %c0_80 = arith.constant 0 : index
    %77 = vector.load %arg22[%c0_79, %c0_80] : memref<32x32xf32, #tpu.memory_space<vmem>>, vector<32x32xf32>
    %c0_81 = arith.constant 0 : index
    %c0_82 = arith.constant 0 : index
    %78 = vector.load %arg23[%c0_81, %c0_82] : memref<1x32xf32, #tpu.memory_space<vmem>>, vector<1x32xf32>
    %c0_83 = arith.constant 0 : index
    %c0_84 = arith.constant 0 : index
    %79 = vector.load %arg24[%c0_83, %c0_84] : memref<32x32xf32, #tpu.memory_space<vmem>>, vector<32x32xf32>
    %c0_85 = arith.constant 0 : index
    %c0_86 = arith.constant 0 : index
    %80 = vector.load %arg25[%c0_85, %c0_86] : memref<1x32xf32, #tpu.memory_space<vmem>>, vector<1x32xf32>
    %c0_87 = arith.constant 0 : index
    %c0_88 = arith.constant 0 : index
    %81 = vector.load %arg26[%c0_87, %c0_88] : memref<32x32xf32, #tpu.memory_space<vmem>>, vector<32x32xf32>
    %c0_89 = arith.constant 0 : index
    %c0_90 = arith.constant 0 : index
    %82 = vector.load %arg27[%c0_89, %c0_90] : memref<32x32xf32, #tpu.memory_space<vmem>>, vector<32x32xf32>
    %c0_91 = arith.constant 0 : index
    %c0_92 = arith.constant 0 : index
    %83 = vector.load %arg28[%c0_91, %c0_92] : memref<1x32xf32, #tpu.memory_space<vmem>>, vector<1x32xf32>
    %cst_93 = arith.constant dense<0.000000e+00> : vector<8x32xf32>
    %84 = tpu.matmul %75, %77, %cst_93 {dimension_numbers = #tpu.dot_dimension_numbers<[1], [0], [0], [1], [0, 0, 1, 1], [], []>} : vector<8x32xf32>, vector<32x32xf32>, vector<8x32xf32> -> vector<8x32xf32>
    %85 = vector.broadcast %78 : vector<1x32xf32> to vector<8x32xf32>
    %86 = arith.addf %84, %85 : vector<8x32xf32>
    %cst_94 = arith.constant 0.000000e+00 : f32
    %87 = vector.broadcast %cst_94 : f32 to vector<8x32xf32>
    %88 = arith.maximumf %86, %87 : vector<8x32xf32>
    %cst_95 = arith.constant dense<0.000000e+00> : vector<8x32xf32>
    %89 = tpu.matmul %76, %73, %cst_95 {dimension_numbers = #tpu.dot_dimension_numbers<[1], [0], [0], [1], [0, 0, 1, 1], [], []>} : vector<8x16xf32>, vector<16x32xf32>, vector<8x32xf32> -> vector<8x32xf32>
    %cst_96 = arith.constant dense<0.000000e+00> : vector<8x32xf32>
    %90 = tpu.matmul %89, %79, %cst_96 {dimension_numbers = #tpu.dot_dimension_numbers<[1], [0], [0], [1], [0, 0, 1, 1], [], []>} : vector<8x32xf32>, vector<32x32xf32>, vector<8x32xf32> -> vector<8x32xf32>
    %91 = vector.broadcast %80 : vector<1x32xf32> to vector<8x32xf32>
    %92 = arith.addf %90, %91 : vector<8x32xf32>
    %cst_97 = arith.constant 0.000000e+00 : f32
    %93 = vector.broadcast %cst_97 : f32 to vector<8x32xf32>
    %94 = arith.maximumf %92, %93 : vector<8x32xf32>
    %cst_98 = arith.constant dense<0.000000e+00> : vector<8x32xf32>
    %95 = tpu.matmul %88, %81, %cst_98 {dimension_numbers = #tpu.dot_dimension_numbers<[1], [0], [0], [1], [0, 0, 1, 1], [], []>} : vector<8x32xf32>, vector<32x32xf32>, vector<8x32xf32> -> vector<8x32xf32>
    %cst_99 = arith.constant dense<0.000000e+00> : vector<8x32xf32>
    %96 = tpu.matmul %94, %82, %cst_99 {dimension_numbers = #tpu.dot_dimension_numbers<[1], [0], [0], [1], [0, 0, 1, 1], [], []>} : vector<8x32xf32>, vector<32x32xf32>, vector<8x32xf32> -> vector<8x32xf32>
    %97 = arith.addf %95, %96 : vector<8x32xf32>
    %98 = vector.broadcast %83 : vector<1x32xf32> to vector<8x32xf32>
    %99 = arith.addf %97, %98 : vector<8x32xf32>
    %cst_100 = arith.constant 0.000000e+00 : f32
    %100 = vector.broadcast %cst_100 : f32 to vector<8x32xf32>
    %101 = arith.maximumf %99, %100 : vector<8x32xf32>
    %c16_101 = arith.constant 16 : index
    %c0_102 = arith.constant 0 : index
    %102 = vector.load %arg31[%c16_101, %c0_102] : memref<24x32xf32, #tpu.memory_space<vmem>>, vector<8x32xf32>
    %103 = arith.addf %102, %101 : vector<8x32xf32>
    %c0_103 = arith.constant 0 : index
    %c0_104 = arith.constant 0 : index
    %104 = vector.load %arg30[%c0_103, %c0_104] : memref<8x32xf32, #tpu.memory_space<vmem>>, vector<8x32xf32>
    tpu.vector_store %arg30[%c0_103, %c0_104], %103 {strides = array<i32>} : memref<8x32xf32, #tpu.memory_space<vmem>>, vector<8x32xf32>,
    return
  }
  func.func @transform_0(%arg0: i32) -> (i32, i32) {
    %c0_i32 = arith.constant 0 : i32
    %c0_i32_0 = arith.constant 0 : i32
    %c0_i32_1 = arith.constant 0 : i32
    return %c0_i32, %c0_i32_0 : i32, i32
  }
  func.func @transform_1(%arg0: i32) -> (i32, i32) {
    %c0_i32 = arith.constant 0 : i32
    %c0_i32_0 = arith.constant 0 : i32
    %c0_i32_1 = arith.constant 0 : i32
    return %c0_i32, %c0_i32_0 : i32, i32
  }
  func.func @transform_2(%arg0: i32) -> (i32, i32) {
    %c0_i32 = arith.constant 0 : i32
    %c0_i32_0 = arith.constant 0 : i32
    %c0_i32_1 = arith.constant 0 : i32
    return %c0_i32, %c0_i32_0 : i32, i32
  }
  func.func @transform_3(%arg0: i32) -> (i32, i32) {
    %c0_i32 = arith.constant 0 : i32
    %c0_i32_0 = arith.constant 0 : i32
    %c0_i32_1 = arith.constant 0 : i32
    return %c0_i32, %c0_i32_0 : i32, i32
  }
  func.func @transform_4(%arg0: i32) -> (i32, i32) {
    %c0_i32 = arith.constant 0 : i32
    %c0_i32_0 = arith.constant 0 : i32
    %c0_i32_1 = arith.constant 0 : i32
    return %c0_i32, %c0_i32_0 : i32, i32
  }
  func.func @transform_5(%arg0: i32) -> (i32, i32) {
    %c0_i32 = arith.constant 0 : i32
    %c0_i32_0 = arith.constant 0 : i32
    %c0_i32_1 = arith.constant 0 : i32
    return %c0_i32, %c0_i32_0 : i32, i32
  }
  func.func @transform_6(%arg0: i32) -> (i32, i32) {
    %c0_i32 = arith.constant 0 : i32
    %c0_i32_0 = arith.constant 0 : i32
    %c0_i32_1 = arith.constant 0 : i32
    return %c0_i32, %c0_i32_0 : i32, i32
  }
  func.func @transform_7(%arg0: i32) -> (i32, i32) {
    %c0_i32 = arith.constant 0 : i32
    %c0_i32_0 = arith.constant 0 : i32
    %c0_i32_1 = arith.constant 0 : i32
    return %c0_i32, %c0_i32_0 : i32, i32
  }
  func.func @transform_8(%arg0: i32) -> (i32, i32) {
    %c0_i32 = arith.constant 0 : i32
    %c0_i32_0 = arith.constant 0 : i32
    %c0_i32_1 = arith.constant 0 : i32
    return %c0_i32, %c0_i32_0 : i32, i32
  }
  func.func @transform_9(%arg0: i32) -> (i32, i32) {
    %c0_i32 = arith.constant 0 : i32
    %c0_i32_0 = arith.constant 0 : i32
    %c0_i32_1 = arith.constant 0 : i32
    return %c0_i32, %c0_i32_0 : i32, i32
  }
  func.func @transform_10(%arg0: i32) -> (i32, i32) {
    %c0_i32 = arith.constant 0 : i32
    %c0_i32_0 = arith.constant 0 : i32
    %c0_i32_1 = arith.constant 0 : i32
    return %c0_i32, %c0_i32_0 : i32, i32
  }
  func.func @transform_11(%arg0: i32) -> (i32, i32) {
    %c0_i32 = arith.constant 0 : i32
    %c0_i32_0 = arith.constant 0 : i32
    %c0_i32_1 = arith.constant 0 : i32
    return %c0_i32, %c0_i32_0 : i32, i32
  }
  func.func @transform_12(%arg0: i32) -> (i32, i32) {
    %c0_i32 = arith.constant 0 : i32
    %c0_i32_0 = arith.constant 0 : i32
    %c0_i32_1 = arith.constant 0 : i32
    return %c0_i32, %c0_i32_0 : i32, i32
  }
  func.func @transform_13(%arg0: i32) -> (i32, i32) {
    %c0_i32 = arith.constant 0 : i32
    %c0_i32_0 = arith.constant 0 : i32
    %c0_i32_1 = arith.constant 0 : i32
    return %c0_i32, %c0_i32_0 : i32, i32
  }
  func.func @transform_14(%arg0: i32) -> (i32, i32) {
    %c0_i32 = arith.constant 0 : i32
    %c0_i32_0 = arith.constant 0 : i32
    %c0_i32_1 = arith.constant 0 : i32
    return %c0_i32, %c0_i32_0 : i32, i32
  }
  func.func @transform_15(%arg0: i32) -> (i32, i32) {
    %c0_i32 = arith.constant 0 : i32
    %c0_i32_0 = arith.constant 0 : i32
    %c0_i32_1 = arith.constant 0 : i32
    return %c0_i32, %c0_i32_0 : i32, i32
  }
  func.func @transform_16(%arg0: i32) -> (i32, i32) {
    %c0_i32 = arith.constant 0 : i32
    %c0_i32_0 = arith.constant 0 : i32
    %c0_i32_1 = arith.constant 0 : i32
    return %c0_i32, %c0_i32_0 : i32, i32
  }
  func.func @transform_17(%arg0: i32) -> (i32, i32) {
    %c0_i32 = arith.constant 0 : i32
    %c0_i32_0 = arith.constant 0 : i32
    %c0_i32_1 = arith.constant 0 : i32
    return %c0_i32, %c0_i32_0 : i32, i32
  }
  func.func @transform_18(%arg0: i32) -> (i32, i32) {
    %c0_i32 = arith.constant 0 : i32
    %c0_i32_0 = arith.constant 0 : i32
    %c0_i32_1 = arith.constant 0 : i32
    return %c0_i32, %c0_i32_0 : i32, i32
  }
  func.func @transform_19(%arg0: i32) -> (i32, i32) {
    %c0_i32 = arith.constant 0 : i32
    %c0_i32_0 = arith.constant 0 : i32
    %c0_i32_1 = arith.constant 0 : i32
    return %c0_i32, %c0_i32_0 : i32, i32
  }
  func.func @transform_20(%arg0: i32) -> (i32, i32) {
    %c0_i32 = arith.constant 0 : i32
    %c0_i32_0 = arith.constant 0 : i32
    %c0_i32_1 = arith.constant 0 : i32
    return %c0_i32, %c0_i32_0 : i32, i32
  }
  func.func @transform_21(%arg0: i32) -> (i32, i32) {
    %c0_i32 = arith.constant 0 : i32
    %c0_i32_0 = arith.constant 0 : i32
    %c0_i32_1 = arith.constant 0 : i32
    return %c0_i32, %c0_i32_0 : i32, i32
  }
  func.func @transform_22(%arg0: i32) -> (i32, i32) {
    %c0_i32 = arith.constant 0 : i32
    %c0_i32_0 = arith.constant 0 : i32
    %c0_i32_1 = arith.constant 0 : i32
    return %c0_i32, %c0_i32_0 : i32, i32
  }
  func.func @transform_23(%arg0: i32) -> (i32, i32) {
    %c0_i32 = arith.constant 0 : i32
    %c0_i32_0 = arith.constant 0 : i32
    %c0_i32_1 = arith.constant 0 : i32
    return %c0_i32, %c0_i32_0 : i32, i32
  }
  func.func @transform_24(%arg0: i32) -> (i32, i32) {
    %c0_i32 = arith.constant 0 : i32
    %c0_i32_0 = arith.constant 0 : i32
    %c0_i32_1 = arith.constant 0 : i32
    return %c0_i32, %c0_i32_0 : i32, i32
  }
  func.func @transform_25(%arg0: i32) -> (i32, i32) {
    %c0_i32 = arith.constant 0 : i32
    %c0_i32_0 = arith.constant 0 : i32
    %c0_i32_1 = arith.constant 0 : i32
    return %c0_i32, %c0_i32_0 : i32, i32
  }
  func.func @transform_26(%arg0: i32) -> (i32, i32) {
    %c0_i32 = arith.constant 0 : i32
    %c0_i32_0 = arith.constant 0 : i32
    %c0_i32_1 = arith.constant 0 : i32
    return %c0_i32, %c0_i32_0 : i32, i32
  }
  func.func @transform_27(%arg0: i32) -> (i32, i32) {
    %c0_i32 = arith.constant 0 : i32
    %c0_i32_0 = arith.constant 0 : i32
    %c0_i32_1 = arith.constant 0 : i32
    return %c0_i32, %c0_i32_0 : i32, i32
  }
  func.func @transform_28(%arg0: i32) -> (i32, i32) {
    %c0_i32 = arith.constant 0 : i32
    %c0_i32_0 = arith.constant 0 : i32
    %c0_i32_1 = arith.constant 0 : i32
    return %c0_i32, %c0_i32_0 : i32, i32
  }
  func.func @transform_29(%arg0: i32) -> (i32, i32) {
    %c0_i32 = arith.constant 0 : i32
    %c0_i32_0 = arith.constant 0 : i32
    %c0_i32_1 = arith.constant 0 : i32
    return %c0_i32, %c0_i32_0 : i32, i32
  }
}

</mosaic_0001>

<llo_original>
// kernel: hyper_mp_block.1
$region0: #{hyper_mp_block.1}
  #allocation0 [shape = 'u32[]', space=smem, size = 0x4, offset = 0x4, fixed_abs, tag = 'smem constant byte address 0x4 - core index']
  #allocation1 [shape = 'u32[72,128]{1,0:T(1,128)}', space=vmem, size = 0x9000, scoped, tag = 'internal scratch']
  #allocation2 [shape = 'f32[24,32]{1,0:T(8,128)}', space=vmem, size = 0x3000, scoped, tag = 'scratch operand']
  %s0 = inlined_call_operand.smem [shape: u32[30], index: -1, kind: input, shape index: {}]
  %s1 = sld [smem:[%s0]]
  %s2 = scalar_lea.smem %s0, 1
  %s3 = sld [smem:[%s2]]
  %s4 = scalar_lea.smem %s0, 2
  %s5 = sld [smem:[%s4]]
  %s6 = scalar_lea.smem %s0, 3
  %s7 = sld [smem:[%s6]]
  %s8 = scalar_lea.smem %s0, 4
  %s9 = sld [smem:[%s8]]
  %s10 = scalar_lea.smem %s0, 5
  %s11 = sld [smem:[%s10]]
  %s12 = scalar_lea.smem %s0, 6
  %s13 = sld [smem:[%s12]]
  %s14 = scalar_lea.smem %s0, 7
  %s15 = sld [smem:[%s14]]
  %s16 = scalar_lea.smem %s0, 8
  %s17 = sld [smem:[%s16]]
  %s18 = scalar_lea.smem %s0, 9
  %s19 = sld [smem:[%s18]]
  %s20 = scalar_lea.smem %s0, 10
  %s21 = sld [smem:[%s20]]
  %s22 = scalar_lea.smem %s0, 11
  %s23 = sld [smem:[%s22]]
  %s24 = scalar_lea.smem %s0, 12
  %s25 = sld [smem:[%s24]]
  %s26 = scalar_lea.smem %s0, 13
  %s27 = sld [smem:[%s26]]
  %s28 = scalar_lea.smem %s0, 14
  %s29 = sld [smem:[%s28]]
  %s30 = scalar_lea.smem %s0, 15
  %s31 = sld [smem:[%s30]]
  %s32 = scalar_lea.smem %s0, 16
  %s33 = sld [smem:[%s32]]
  %s34 = scalar_lea.smem %s0, 17
  %s35 = sld [smem:[%s34]]
  %s36 = scalar_lea.smem %s0, 18
  %s37 = sld [smem:[%s36]]
  %s38 = scalar_lea.smem %s0, 19
  %s39 = sld [smem:[%s38]]
  %s40 = scalar_lea.smem %s0, 20
  %s41 = sld [smem:[%s40]]
  %s42 = scalar_lea.smem %s0, 21
  %s43 = sld [smem:[%s42]]
  %s44 = scalar_lea.smem %s0, 22
  %s45 = sld [smem:[%s44]]
  %s46 = scalar_lea.smem %s0, 23
  %s47 = sld [smem:[%s46]]
  %s48 = scalar_lea.smem %s0, 24
  %s49 = sld [smem:[%s48]]
  %s50 = scalar_lea.smem %s0, 25
  %s51 = sld [smem:[%s50]]
  %s52 = scalar_lea.smem %s0, 26
  %s53 = sld [smem:[%s52]]
  %s54 = scalar_lea.smem %s0, 27
  %s55 = sld [smem:[%s54]]
  %s56 = scalar_lea.smem %s0, 28
  %s57 = sld [smem:[%s56]]
  %s58 = scalar_lea.smem %s0, 29
  %s59 = sld [smem:[%s58]]
  %60 = xla_tuple %s57, %s59
  %s61 = sld [smem:[#allocation0]]
  $region230: #{hyper_mp_block.1} parent=0
    _
  %s63 = ssub.s32 1, %s61
  %s64 = scalar_select 0, %s63, %s61
  $region1: #{hyper_mp_block.1} parent=0
    #allocation3 [shape = 'u8[8192]{0}', space=vmem, size = 0x2000, scoped, tag = 'input window, operand 0, single buffered']
    #allocation4 [shape = 's32[1]{0}', space=sflag, size = 0x4, scoped, tag = 'scoped memory for hyper_mp_block.1']
    #allocation5 [shape = 's32[1]{0}', space=sflag, size = 0x4, scoped, tag = 'scoped memory for hyper_mp_block.1']
    #allocation6 [shape = 'u8[4096]{0}', space=vmem, size = 0x1000, scoped, tag = 'input window, operand 1, single buffered']
    #allocation7 [shape = 's32[1]{0}', space=sflag, size = 0x4, scoped, tag = 'scoped memory for hyper_mp_block.1']
    #allocation8 [shape = 'u8[8192]{0}', space=vmem, size = 0x2000, scoped, tag = 'input window, operand 2, single buffered']
    #allocation9 [shape = 'u8[4096]{0}', space=vmem, size = 0x1000, scoped, tag = 'input window, operand 5, single buffered']
    #allocation10 [shape = 's32[1]{0}', space=sflag, size = 0x4, scoped, tag = 'scoped memory for hyper_mp_block.1']
    #allocation11 [shape = 'u8[16384]{0}', space=vmem, size = 0x4000, scoped, tag = 'input window, operand 6, single buffered']
    #allocation12 [shape = 'u8[512]{0}', space=vmem, size = 0x400, scoped, tag = 'input window, operand 7, single buffered']
    #allocation13 [shape = 's32[1]{0}', space=sflag, size = 0x4, scoped, tag = 'scoped memory for hyper_mp_block.1']
    #allocation14 [shape = 'u8[16384]{0}', space=vmem, size = 0x4000, scoped, tag = 'input window, operand 8, single buffered']
    #allocation15 [shape = 'u8[512]{0}', space=vmem, size = 0x400, scoped, tag = 'input window, operand 9, single buffered']
    #allocation16 [shape = 's32[1]{0}', space=sflag, size = 0x4, scoped, tag = 'scoped memory for hyper_mp_block.1']
    #allocation17 [shape = 'u8[16384]{0}', space=vmem, size = 0x4000, scoped, tag = 'input window, operand 10, single buffered']
    #allocation18 [shape = 'u8[512]{0}', space=vmem, size = 0x400, scoped, tag = 'input window, operand 11, single buffered']
    #allocation19 [shape = 's32[1]{0}', space=sflag, size = 0x4, scoped, tag = 'scoped memory for hyper_mp_block.1']
    #allocation20 [shape = 'u8[16384]{0}', space=vmem, size = 0x4000, scoped, tag = 'input window, operand 12, single buffered']
    #allocation21 [shape = 'u8[512]{0}', space=vmem, size = 0x400, scoped, tag = 'input window, operand 13, single buffered']
    #allocation22 [shape = 's32[1]{0}', space=sflag, size = 0x4, scoped, tag = 'scoped memory for hyper_mp_block.1']
    #allocation23 [shape = 'u8[16384]{0}', space=vmem, size = 0x4000, scoped, tag = 'input window, operand 14, single buffered']
    #allocation24 [shape = 'u8[512]{0}', space=vmem, size = 0x400, scoped, tag = 'input window, operand 15, single buffered']
    #allocation25 [shape = 's32[1]{0}', space=sflag, size = 0x4, scoped, tag = 'scoped memory for hyper_mp_block.1']
    #allocation26 [shape = 'u8[512]{0}', space=vmem, size = 0x400, scoped, tag = 'input window, operand 17, single buffered']
    #allocation27 [shape = 'u8[16384]{0}', space=vmem, size = 0x4000, scoped, tag = 'input window, operand 18, single buffered']
    #allocation28 [shape = 's32[1]{0}', space=sflag, size = 0x4, scoped, tag = 'scoped memory for hyper_mp_block.1']
    #allocation29 [shape = 'u8[16384]{0}', space=vmem, size = 0x4000, scoped, tag = 'input window, operand 19, single buffered']
    #allocation30 [shape = 'u8[512]{0}', space=vmem, size = 0x400, scoped, tag = 'input window, operand 20, single buffered']
    #allocation31 [shape = 's32[1]{0}', space=sflag, size = 0x4, scoped, tag = 'scoped memory for hyper_mp_block.1']
    #allocation32 [shape = 'u8[16384]{0}', space=vmem, size = 0x4000, scoped, tag = 'input window, operand 21, single buffered']
    #allocation33 [shape = 'u8[512]{0}', space=vmem, size = 0x400, scoped, tag = 'input window, operand 22, single buffered']
    #allocation34 [shape = 's32[1]{0}', space=sflag, size = 0x4, scoped, tag = 'scoped memory for hyper_mp_block.1']
    #allocation35 [shape = 'u8[16384]{0}', space=vmem, size = 0x4000, scoped, tag = 'input window, operand 23, single buffered']
    #allocation36 [shape = 'u8[512]{0}', space=vmem, size = 0x400, scoped, tag = 'input window, operand 24, single buffered']
    #allocation37 [shape = 's32[1]{0}', space=sflag, size = 0x4, scoped, tag = 'scoped memory for hyper_mp_block.1']
    #allocation38 [shape = 'u8[16384]{0}', space=vmem, size = 0x4000, scoped, tag = 'input window, operand 25, single buffered']
    #allocation39 [shape = 'u8[16384]{0}', space=vmem, size = 0x4000, scoped, tag = 'input window, operand 26, single buffered']
    #allocation40 [shape = 's32[1]{0}', space=sflag, size = 0x4, scoped, tag = 'scoped memory for hyper_mp_block.1']
    #allocation41 [shape = 'u8[512]{0}', space=vmem, size = 0x400, scoped, tag = 'input window, operand 27, single buffered']
    #allocation42 [shape = 'u8[8192]{0}', space=vmem, size = 0x2000, scoped, tag = 'output window, operand 0, single buffered']
    #allocation43 [shape = 'u8[4096]{0}', space=vmem, size = 0x1000, scoped, tag = 'output window, operand 1, single buffered']
    #allocation44 [shape = 's32[1]{0}', space=sflag, size = 0x4, scoped, tag = 'scoped memory for hyper_mp_block.1']
    %65 = vsyncpa [#allocation4], 0
    %66 = vsyncpa [#allocation7], 0
    %67 = vsyncpa [#allocation10], 0
    %68 = vsyncpa [#allocation13], 0
    %69 = vsyncpa [#allocation16], 0
    %70 = vsyncpa [#allocation19], 0
    %71 = vsyncpa [#allocation22], 0
    %72 = vsyncpa [#allocation25], 0
    %73 = vsyncpa [#allocation28], 0
    %74 = vsyncpa [#allocation31], 0
    %75 = vsyncpa [#allocation34], 0
    %76 = vsyncpa [#allocation37], 0
    %77 = vsyncpa [#allocation40], 0
    %78 = vsyncpa [#allocation5], 0
    %79 = vsyncpa [#allocation44], 0
    // Predicated region
    $region2: #{hyper_mp_block.1} parent=1 // pred_check
      _
    $region3: #{hyper_mp_block.1} parent=1 // pred_check_branch
      %81 = sbr.rel (0) target = $region5
    $region4: #{hyper_mp_block.1} parent=1 // pred_region
      %83 = vsyncadd [#allocation4], 0
      %s84 = sshll.u32 %s1, 4
      %s85 = int_to_ptr.hbm [resolvable:$true] %s84
      %s86 = sshll.u32 [#allocation3], 4
      %s87 = int_to_ptr.vmem [resolvable:$true] %s86
      %92 = dma.hbm_to_vmem [thread:$0]  %s85, 256, %s87, [#allocation4], 128, 128, 8
    $region5: #{hyper_mp_block.1} parent=1 // pred_fallthru
      _
    // Predicated region
    $region6: #{hyper_mp_block.1} parent=1 // pred_check
      _
    $region7: #{hyper_mp_block.1} parent=1 // pred_check_branch
      %94 = sbr.rel (0) target = $region9
    $region8: #{hyper_mp_block.1} parent=1 // pred_region
      %96 = vsyncadd [#allocation7], 0
      %s98 = sshll.u32 %s3, 4
      %s99 = int_to_ptr.hbm [resolvable:$true] %s98
      %s100 = sshll.u32 [#allocation6], 4
      %s101 = int_to_ptr.vmem [resolvable:$true] %s100
      %103 = dma.hbm_to_vmem [thread:$0]  %s99, 128, %s101, [#allocation7]
    $region9: #{hyper_mp_block.1} parent=1 // pred_fallthru
      _
    // Predicated region
    $region10: #{hyper_mp_block.1} parent=1 // pred_check
      _
    $region11: #{hyper_mp_block.1} parent=1 // pred_check_branch
      %105 = sbr.rel (0) target = $region13
    $region12: #{hyper_mp_block.1} parent=1 // pred_region
      %107 = vsyncadd [#allocation7], 0
      %s108 = sshll.u32 %s5, 4
      %s109 = int_to_ptr.hbm [resolvable:$true] %s108
      %s110 = sshll.u32 [#allocation8], 4
      %s111 = int_to_ptr.vmem [resolvable:$true] %s110
      %116 = dma.hbm_to_vmem [thread:$0]  %s109, 256, %s111, [#allocation7], 128, 128, 8
    $region13: #{hyper_mp_block.1} parent=1 // pred_fallthru
      _
    // Predicated region
    $region14: #{hyper_mp_block.1} parent=1 // pred_check
      _
    $region15: #{hyper_mp_block.1} parent=1 // pred_check_branch
      %118 = sbr.rel (0) target = $region17
    $region16: #{hyper_mp_block.1} parent=1 // pred_region
      _
    $region17: #{hyper_mp_block.1} parent=1 // pred_fallthru
      _
    // Predicated region
    $region18: #{hyper_mp_block.1} parent=1 // pred_check
      _
    $region19: #{hyper_mp_block.1} parent=1 // pred_check_branch
      %120 = sbr.rel (0) target = $region21
    $region20: #{hyper_mp_block.1} parent=1 // pred_region
      _
    $region21: #{hyper_mp_block.1} parent=1 // pred_fallthru
      _
    // Predicated region
    $region22: #{hyper_mp_block.1} parent=1 // pred_check
      _
    $region23: #{hyper_mp_block.1} parent=1 // pred_check_branch
      %122 = sbr.rel (0) target = $region25
    $region24: #{hyper_mp_block.1} parent=1 // pred_region
      %124 = vsyncadd [#allocation10], 0
      %s126 = sshll.u32 %s11, 4
      %s127 = int_to_ptr.hbm [resolvable:$true] %s126
      %s128 = sshll.u32 [#allocation9], 4
      %s129 = int_to_ptr.vmem [resolvable:$true] %s128
      %131 = dma.hbm_to_vmem [thread:$0]  %s127, 128, %s129, [#allocation10]
    $region25: #{hyper_mp_block.1} parent=1 // pred_fallthru
      _
    // Predicated region
    $region26: #{hyper_mp_block.1} parent=1 // pred_check
      _
    $region27: #{hyper_mp_block.1} parent=1 // pred_check_branch
      %133 = sbr.rel (0) target = $region29
    $region28: #{hyper_mp_block.1} parent=1 // pred_region
      %135 = vsyncadd [#allocation10], 0
      %s136 = sshll.u32 %s13, 4
      %s137 = int_to_ptr.hbm [resolvable:$true] %s136
      %s138 = sshll.u32 [#allocation11], 4
      %s139 = int_to_ptr.vmem [resolvable:$true] %s138
      %144 = dma.hbm_to_vmem [thread:$0]  %s137, 512, %s139, [#allocation10], 128, 128, 8
    $region29: #{hyper_mp_block.1} parent=1 // pred_fallthru
      _
    // Predicated region
    $region30: #{hyper_mp_block.1} parent=1 // pred_check
      _
    $region31: #{hyper_mp_block.1} parent=1 // pred_check_branch
      %146 = sbr.rel (0) target = $region33
    $region32: #{hyper_mp_block.1} parent=1 // pred_region
      %148 = vsyncadd [#allocation13], 0
      %s150 = sshll.u32 %s15, 4
      %s151 = int_to_ptr.hbm [resolvable:$true] %s150
      %s152 = sshll.u32 [#allocation12], 4
      %s153 = int_to_ptr.vmem [resolvable:$true] %s152
      %155 = dma.hbm_to_vmem [thread:$0]  %s151, 16, %s153, [#allocation13]
    $region33: #{hyper_mp_block.1} parent=1 // pred_fallthru
      _
    // Predicated region
    $region34: #{hyper_mp_block.1} parent=1 // pred_check
      _
    $region35: #{hyper_mp_block.1} parent=1 // pred_check_branch
      %157 = sbr.rel (0) target = $region37
    $region36: #{hyper_mp_block.1} parent=1 // pred_region
      %159 = vsyncadd [#allocation13], 0
      %s160 = sshll.u32 %s17, 4
      %s161 = int_to_ptr.hbm [resolvable:$true] %s160
      %s162 = sshll.u32 [#allocation14], 4
      %s163 = int_to_ptr.vmem [resolvable:$true] %s162
      %168 = dma.hbm_to_vmem [thread:$0]  %s161, 512, %s163, [#allocation13], 128, 128, 8
    $region37: #{hyper_mp_block.1} parent=1 // pred_fallthru
      _
    // Predicated region
    $region38: #{hyper_mp_block.1} parent=1 // pred_check
      _
    $region39: #{hyper_mp_block.1} parent=1 // pred_check_branch
      %170 = sbr.rel (0) target = $region41
    $region40: #{hyper_mp_block.1} parent=1 // pred_region
      %172 = vsyncadd [#allocation16], 0
      %s174 = sshll.u32 %s19, 4
      %s175 = int_to_ptr.hbm [resolvable:$true] %s174
      %s176 = sshll.u32 [#allocation15], 4
      %s177 = int_to_ptr.vmem [resolvable:$true] %s176
      %179 = dma.hbm_to_vmem [thread:$0]  %s175, 16, %s177, [#allocation16]
    $region41: #{hyper_mp_block.1} parent=1 // pred_fallthru
      _
    // Predicated region
    $region42: #{hyper_mp_block.1} parent=1 // pred_check
      _
    $region43: #{hyper_mp_block.1} parent=1 // pred_check_branch
      %181 = sbr.rel (0) target = $region45
    $region44: #{hyper_mp_block.1} parent=1 // pred_region
      %183 = vsyncadd [#allocation16], 0
      %s184 = sshll.u32 %s21, 4
      %s185 = int_to_ptr.hbm [resolvable:$true] %s184
      %s186 = sshll.u32 [#allocation17], 4
      %s187 = int_to_ptr.vmem [resolvable:$true] %s186
      %192 = dma.hbm_to_vmem [thread:$0]  %s185, 512, %s187, [#allocation16], 128, 128, 8
    $region45: #{hyper_mp_block.1} parent=1 // pred_fallthru
      _
    // Predicated region
    $region46: #{hyper_mp_block.1} parent=1 // pred_check
      _
    $region47: #{hyper_mp_block.1} parent=1 // pred_check_branch
      %194 = sbr.rel (0) target = $region49
    $region48: #{hyper_mp_block.1} parent=1 // pred_region
      %196 = vsyncadd [#allocation19], 0
      %s198 = sshll.u32 %s23, 4
      %s199 = int_to_ptr.hbm [resolvable:$true] %s198
      %s200 = sshll.u32 [#allocation18], 4
      %s201 = int_to_ptr.vmem [resolvable:$true] %s200
      %203 = dma.hbm_to_vmem [thread:$0]  %s199, 16, %s201, [#allocation19]
    $region49: #{hyper_mp_block.1} parent=1 // pred_fallthru
      _
    // Predicated region
    $region50: #{hyper_mp_block.1} parent=1 // pred_check
      _
    $region51: #{hyper_mp_block.1} parent=1 // pred_check_branch
      %205 = sbr.rel (0) target = $region53
    $region52: #{hyper_mp_block.1} parent=1 // pred_region
      %207 = vsyncadd [#allocation19], 0
      %s208 = sshll.u32 %s25, 4
      %s209 = int_to_ptr.hbm [resolvable:$true] %s208
      %s210 = sshll.u32 [#allocation20], 4
      %s211 = int_to_ptr.vmem [resolvable:$true] %s210
      %216 = dma.hbm_to_vmem [thread:$0]  %s209, 512, %s211, [#allocation19], 128, 128, 8
    $region53: #{hyper_mp_block.1} parent=1 // pred_fallthru
      _
    // Predicated region
    $region54: #{hyper_mp_block.1} parent=1 // pred_check
      _
    $region55: #{hyper_mp_block.1} parent=1 // pred_check_branch
      %218 = sbr.rel (0) target = $region57
    $region56: #{hyper_mp_block.1} parent=1 // pred_region
      %220 = vsyncadd [#allocation22], 0
      %s222 = sshll.u32 %s27, 4
      %s223 = int_to_ptr.hbm [resolvable:$true] %s222
      %s224 = sshll.u32 [#allocation21], 4
      %s225 = int_to_ptr.vmem [resolvable:$true] %s224
      %227 = dma.hbm_to_vmem [thread:$0]  %s223, 16, %s225, [#allocation22]
    $region57: #{hyper_mp_block.1} parent=1 // pred_fallthru
      _
    // Predicated region
    $region58: #{hyper_mp_block.1} parent=1 // pred_check
      _
    $region59: #{hyper_mp_block.1} parent=1 // pred_check_branch
      %229 = sbr.rel (0) target = $region61
    $region60: #{hyper_mp_block.1} parent=1 // pred_region
      %231 = vsyncadd [#allocation22], 0
      %s232 = sshll.u32 %s29, 4
      %s233 = int_to_ptr.hbm [resolvable:$true] %s232
      %s234 = sshll.u32 [#allocation23], 4
      %s235 = int_to_ptr.vmem [resolvable:$true] %s234
      %240 = dma.hbm_to_vmem [thread:$0]  %s233, 512, %s235, [#allocation22], 128, 128, 8
    $region61: #{hyper_mp_block.1} parent=1 // pred_fallthru
      _
    // Predicated region
    $region62: #{hyper_mp_block.1} parent=1 // pred_check
      _
    $region63: #{hyper_mp_block.1} parent=1 // pred_check_branch
      %242 = sbr.rel (0) target = $region65
    $region64: #{hyper_mp_block.1} parent=1 // pred_region
      %244 = vsyncadd [#allocation25], 0
      %s246 = sshll.u32 %s31, 4
      %s247 = int_to_ptr.hbm [resolvable:$true] %s246
      %s248 = sshll.u32 [#allocation24], 4
      %s249 = int_to_ptr.vmem [resolvable:$true] %s248
      %251 = dma.hbm_to_vmem [thread:$0]  %s247, 16, %s249, [#allocation25]
    $region65: #{hyper_mp_block.1} parent=1 // pred_fallthru
      _
    // Predicated region
    $region66: #{hyper_mp_block.1} parent=1 // pred_check
      _
    $region67: #{hyper_mp_block.1} parent=1 // pred_check_branch
      %253 = sbr.rel (0) target = $region69
    $region68: #{hyper_mp_block.1} parent=1 // pred_region
      _
    $region69: #{hyper_mp_block.1} parent=1 // pred_fallthru
      _
    // Predicated region
    $region70: #{hyper_mp_block.1} parent=1 // pred_check
      _
    $region71: #{hyper_mp_block.1} parent=1 // pred_check_branch
      %255 = sbr.rel (0) target = $region73
    $region72: #{hyper_mp_block.1} parent=1 // pred_region
      %257 = vsyncadd [#allocation25], 0
      %s259 = sshll.u32 %s35, 4
      %s260 = int_to_ptr.hbm [resolvable:$true] %s259
      %s261 = sshll.u32 [#allocation26], 4
      %s262 = int_to_ptr.vmem [resolvable:$true] %s261
      %264 = dma.hbm_to_vmem [thread:$0]  %s260, 16, %s262, [#allocation25]
    $region73: #{hyper_mp_block.1} parent=1 // pred_fallthru
      _
    // Predicated region
    $region74: #{hyper_mp_block.1} parent=1 // pred_check
      _
    $region75: #{hyper_mp_block.1} parent=1 // pred_check_branch
      %266 = sbr.rel (0) target = $region77
    $region76: #{hyper_mp_block.1} parent=1 // pred_region
      %268 = vsyncadd [#allocation28], 0
      %s269 = sshll.u32 %s37, 4
      %s270 = int_to_ptr.hbm [resolvable:$true] %s269
      %s271 = sshll.u32 [#allocation27], 4
      %s272 = int_to_ptr.vmem [resolvable:$true] %s271
      %277 = dma.hbm_to_vmem [thread:$0]  %s270, 512, %s272, [#allocation28], 128, 128, 8
    $region77: #{hyper_mp_block.1} parent=1 // pred_fallthru
      _
    // Predicated region
    $region78: #{hyper_mp_block.1} parent=1 // pred_check
      _
    $region79: #{hyper_mp_block.1} parent=1 // pred_check_branch
      %279 = sbr.rel (0) target = $region81
    $region80: #{hyper_mp_block.1} parent=1 // pred_region
      %281 = vsyncadd [#allocation28], 0
      %s282 = sshll.u32 %s39, 4
      %s283 = int_to_ptr.hbm [resolvable:$true] %s282
      %s284 = sshll.u32 [#allocation29], 4
      %s285 = int_to_ptr.vmem [resolvable:$true] %s284
      %290 = dma.hbm_to_vmem [thread:$0]  %s283, 512, %s285, [#allocation28], 128, 128, 8
    $region81: #{hyper_mp_block.1} parent=1 // pred_fallthru
      _
    // Predicated region
    $region82: #{hyper_mp_block.1} parent=1 // pred_check
      _
    $region83: #{hyper_mp_block.1} parent=1 // pred_check_branch
      %292 = sbr.rel (0) target = $region85
    $region84: #{hyper_mp_block.1} parent=1 // pred_region
      %294 = vsyncadd [#allocation31], 0
      %s296 = sshll.u32 %s41, 4
      %s297 = int_to_ptr.hbm [resolvable:$true] %s296
      %s298 = sshll.u32 [#allocation30], 4
      %s299 = int_to_ptr.vmem [resolvable:$true] %s298
      %301 = dma.hbm_to_vmem [thread:$0]  %s297, 16, %s299, [#allocation31]
    $region85: #{hyper_mp_block.1} parent=1 // pred_fallthru
      _
    // Predicated region
    $region86: #{hyper_mp_block.1} parent=1 // pred_check
      _
    $region87: #{hyper_mp_block.1} parent=1 // pred_check_branch
      %303 = sbr.rel (0) target = $region89
    $region88: #{hyper_mp_block.1} parent=1 // pred_region
      %305 = vsyncadd [#allocation31], 0
      %s306 = sshll.u32 %s43, 4
      %s307 = int_to_ptr.hbm [resolvable:$true] %s306
      %s308 = sshll.u32 [#allocation32], 4
      %s309 = int_to_ptr.vmem [resolvable:$true] %s308
      %314 = dma.hbm_to_vmem [thread:$0]  %s307, 512, %s309, [#allocation31], 128, 128, 8
    $region89: #{hyper_mp_block.1} parent=1 // pred_fallthru
      _
    // Predicated region
    $region90: #{hyper_mp_block.1} parent=1 // pred_check
      _
    $region91: #{hyper_mp_block.1} parent=1 // pred_check_branch
      %316 = sbr.rel (0) target = $region93
    $region92: #{hyper_mp_block.1} parent=1 // pred_region
      %318 = vsyncadd [#allocation34], 0
      %s320 = sshll.u32 %s45, 4
      %s321 = int_to_ptr.hbm [resolvable:$true] %s320
      %s322 = sshll.u32 [#allocation33], 4
      %s323 = int_to_ptr.vmem [resolvable:$true] %s322
      %325 = dma.hbm_to_vmem [thread:$0]  %s321, 16, %s323, [#allocation34]
    $region93: #{hyper_mp_block.1} parent=1 // pred_fallthru
      _
    // Predicated region
    $region94: #{hyper_mp_block.1} parent=1 // pred_check
      _
    $region95: #{hyper_mp_block.1} parent=1 // pred_check_branch
      %327 = sbr.rel (0) target = $region97
    $region96: #{hyper_mp_block.1} parent=1 // pred_region
      %329 = vsyncadd [#allocation34], 0
      %s330 = sshll.u32 %s47, 4
      %s331 = int_to_ptr.hbm [resolvable:$true] %s330
      %s332 = sshll.u32 [#allocation35], 4
      %s333 = int_to_ptr.vmem [resolvable:$true] %s332
      %338 = dma.hbm_to_vmem [thread:$0]  %s331, 512, %s333, [#allocation34], 128, 128, 8
    $region97: #{hyper_mp_block.1} parent=1 // pred_fallthru
      _
    // Predicated region
    $region98: #{hyper_mp_block.1} parent=1 // pred_check
      _
    $region99: #{hyper_mp_block.1} parent=1 // pred_check_branch
      %340 = sbr.rel (0) target = $region101
    $region100: #{hyper_mp_block.1} parent=1 // pred_region
      %342 = vsyncadd [#allocation37], 0
      %s344 = sshll.u32 %s49, 4
      %s345 = int_to_ptr.hbm [resolvable:$true] %s344
      %s346 = sshll.u32 [#allocation36], 4
      %s347 = int_to_ptr.vmem [resolvable:$true] %s346
      %349 = dma.hbm_to_vmem [thread:$0]  %s345, 16, %s347, [#allocation37]
    $region101: #{hyper_mp_block.1} parent=1 // pred_fallthru
      _
    // Predicated region
    $region102: #{hyper_mp_block.1} parent=1 // pred_check
      _
    $region103: #{hyper_mp_block.1} parent=1 // pred_check_branch
      %351 = sbr.rel (0) target = $region105
    $region104: #{hyper_mp_block.1} parent=1 // pred_region
      %353 = vsyncadd [#allocation37], 0
      %s354 = sshll.u32 %s51, 4
      %s355 = int_to_ptr.hbm [resolvable:$true] %s354
      %s356 = sshll.u32 [#allocation38], 4
      %s357 = int_to_ptr.vmem [resolvable:$true] %s356
      %362 = dma.hbm_to_vmem [thread:$0]  %s355, 512, %s357, [#allocation37], 128, 128, 8
    $region105: #{hyper_mp_block.1} parent=1 // pred_fallthru
      _
    // Predicated region
    $region106: #{hyper_mp_block.1} parent=1 // pred_check
      _
    $region107: #{hyper_mp_block.1} parent=1 // pred_check_branch
      %364 = sbr.rel (0) target = $region109
    $region108: #{hyper_mp_block.1} parent=1 // pred_region
      %366 = vsyncadd [#allocation40], 0
      %s367 = sshll.u32 %s53, 4
      %s368 = int_to_ptr.hbm [resolvable:$true] %s367
      %s369 = sshll.u32 [#allocation39], 4
      %s370 = int_to_ptr.vmem [resolvable:$true] %s369
      %375 = dma.hbm_to_vmem [thread:$0]  %s368, 512, %s370, [#allocation40], 128, 128, 8
    $region109: #{hyper_mp_block.1} parent=1 // pred_fallthru
      _
    // Predicated region
    $region110: #{hyper_mp_block.1} parent=1 // pred_check
      _
    $region111: #{hyper_mp_block.1} parent=1 // pred_check_branch
      %377 = sbr.rel (0) target = $region113
    $region112: #{hyper_mp_block.1} parent=1 // pred_region
      %379 = vsyncadd [#allocation40], 0
      %s381 = sshll.u32 %s55, 4
      %s382 = int_to_ptr.hbm [resolvable:$true] %s381
      %s383 = sshll.u32 [#allocation41], 4
      %s384 = int_to_ptr.vmem [resolvable:$true] %s383
      %386 = dma.hbm_to_vmem [thread:$0]  %s382, 16, %s384, [#allocation40]
    $region113: #{hyper_mp_block.1} parent=1 // pred_fallthru
      _
    // Predicated region
    $region114: #{hyper_mp_block.1} parent=1 // pred_check
      _
    $region115: #{hyper_mp_block.1} parent=1 // pred_check_branch
      %388 = sbr.rel (0) target = $region117
    $region116: #{hyper_mp_block.1} parent=1 // pred_region
      %390 = dma.done [#allocation4], 256
    $region117: #{hyper_mp_block.1} parent=1 // pred_fallthru
      _
    // Predicated region
    $region118: #{hyper_mp_block.1} parent=1 // pred_check
      _
    $region119: #{hyper_mp_block.1} parent=1 // pred_check_branch
      %392 = sbr.rel (0) target = $region121
    $region120: #{hyper_mp_block.1} parent=1 // pred_region
      %394 = dma.done [#allocation7], 128
    $region121: #{hyper_mp_block.1} parent=1 // pred_fallthru
      _
    // Predicated region
    $region122: #{hyper_mp_block.1} parent=1 // pred_check
      _
    $region123: #{hyper_mp_block.1} parent=1 // pred_check_branch
      %396 = sbr.rel (0) target = $region125
    $region124: #{hyper_mp_block.1} parent=1 // pred_region
      %398 = dma.done [#allocation7], 256
    $region125: #{hyper_mp_block.1} parent=1 // pred_fallthru
      _
    // Predicated region
    $region126: #{hyper_mp_block.1} parent=1 // pred_check
      _
    $region127: #{hyper_mp_block.1} parent=1 // pred_check_branch
      %400 = sbr.rel (0) target = $region129
    $region128: #{hyper_mp_block.1} parent=1 // pred_region
      %402 = dma.done [#allocation10], 128
    $region129: #{hyper_mp_block.1} parent=1 // pred_fallthru
      _
    // Predicated region
    $region130: #{hyper_mp_block.1} parent=1 // pred_check
      _
    $region131: #{hyper_mp_block.1} parent=1 // pred_check_branch
      %404 = sbr.rel (0) target = $region133
    $region132: #{hyper_mp_block.1} parent=1 // pred_region
      %406 = dma.done [#allocation10], 512
    $region133: #{hyper_mp_block.1} parent=1 // pred_fallthru
      _
    // Predicated region
    $region134: #{hyper_mp_block.1} parent=1 // pred_check
      _
    $region135: #{hyper_mp_block.1} parent=1 // pred_check_branch
      %408 = sbr.rel (0) target = $region137
    $region136: #{hyper_mp_block.1} parent=1 // pred_region
      %410 = dma.done [#allocation13], 16
    $region137: #{hyper_mp_block.1} parent=1 // pred_fallthru
      _
    // Predicated region
    $region138: #{hyper_mp_block.1} parent=1 // pred_check
      _
    $region139: #{hyper_mp_block.1} parent=1 // pred_check_branch
      %412 = sbr.rel (0) target = $region141
    $region140: #{hyper_mp_block.1} parent=1 // pred_region
      %414 = dma.done [#allocation13], 512
    $region141: #{hyper_mp_block.1} parent=1 // pred_fallthru
      _
    // Predicated region
    $region142: #{hyper_mp_block.1} parent=1 // pred_check
      _
    $region143: #{hyper_mp_block.1} parent=1 // pred_check_branch
      %416 = sbr.rel (0) target = $region145
    $region144: #{hyper_mp_block.1} parent=1 // pred_region
      %418 = dma.done [#allocation16], 16
    $region145: #{hyper_mp_block.1} parent=1 // pred_fallthru
      _
    // Predicated region
    $region146: #{hyper_mp_block.1} parent=1 // pred_check
      _
    $region147: #{hyper_mp_block.1} parent=1 // pred_check_branch
      %420 = sbr.rel (0) target = $region149
    $region148: #{hyper_mp_block.1} parent=1 // pred_region
      %422 = dma.done [#allocation16], 512
    $region149: #{hyper_mp_block.1} parent=1 // pred_fallthru
      _
    // Predicated region
    $region150: #{hyper_mp_block.1} parent=1 // pred_check
      _
    $region151: #{hyper_mp_block.1} parent=1 // pred_check_branch
      %424 = sbr.rel (0) target = $region153
    $region152: #{hyper_mp_block.1} parent=1 // pred_region
      %426 = dma.done [#allocation19], 16
    $region153: #{hyper_mp_block.1} parent=1 // pred_fallthru
      _
    // Predicated region
    $region154: #{hyper_mp_block.1} parent=1 // pred_check
      _
    $region155: #{hyper_mp_block.1} parent=1 // pred_check_branch
      %428 = sbr.rel (0) target = $region157
    $region156: #{hyper_mp_block.1} parent=1 // pred_region
      %430 = dma.done [#allocation19], 512
    $region157: #{hyper_mp_block.1} parent=1 // pred_fallthru
      _
    // Predicated region
    $region158: #{hyper_mp_block.1} parent=1 // pred_check
      _
    $region159: #{hyper_mp_block.1} parent=1 // pred_check_branch
      %432 = sbr.rel (0) target = $region161
    $region160: #{hyper_mp_block.1} parent=1 // pred_region
      %434 = dma.done [#allocation22], 16
    $region161: #{hyper_mp_block.1} parent=1 // pred_fallthru
      _
    // Predicated region
    $region162: #{hyper_mp_block.1} parent=1 // pred_check
      _
    $region163: #{hyper_mp_block.1} parent=1 // pred_check_branch
      %436 = sbr.rel (0) target = $region165
    $region164: #{hyper_mp_block.1} parent=1 // pred_region
      %438 = dma.done [#allocation22], 512
    $region165: #{hyper_mp_block.1} parent=1 // pred_fallthru
      _
    // Predicated region
    $region166: #{hyper_mp_block.1} parent=1 // pred_check
      _
    $region167: #{hyper_mp_block.1} parent=1 // pred_check_branch
      %440 = sbr.rel (0) target = $region169
    $region168: #{hyper_mp_block.1} parent=1 // pred_region
      %442 = dma.done [#allocation25], 16
    $region169: #{hyper_mp_block.1} parent=1 // pred_fallthru
      _
    // Predicated region
    $region170: #{hyper_mp_block.1} parent=1 // pred_check
      _
    $region171: #{hyper_mp_block.1} parent=1 // pred_check_branch
      %444 = sbr.rel (0) target = $region173
    $region172: #{hyper_mp_block.1} parent=1 // pred_region
      %446 = dma.done [#allocation25], 16
    $region173: #{hyper_mp_block.1} parent=1 // pred_fallthru
      _
    // Predicated region
    $region174: #{hyper_mp_block.1} parent=1 // pred_check
      _
    $region175: #{hyper_mp_block.1} parent=1 // pred_check_branch
      %448 = sbr.rel (0) target = $region177
    $region176: #{hyper_mp_block.1} parent=1 // pred_region
      %450 = dma.done [#allocation28], 512
    $region177: #{hyper_mp_block.1} parent=1 // pred_fallthru
      _
    // Predicated region
    $region178: #{hyper_mp_block.1} parent=1 // pred_check
      _
    $region179: #{hyper_mp_block.1} parent=1 // pred_check_branch
      %452 = sbr.rel (0) target = $region181
    $region180: #{hyper_mp_block.1} parent=1 // pred_region
      %454 = dma.done [#allocation28], 512
    $region181: #{hyper_mp_block.1} parent=1 // pred_fallthru
      _
    // Predicated region
    $region182: #{hyper_mp_block.1} parent=1 // pred_check
      _
    $region183: #{hyper_mp_block.1} parent=1 // pred_check_branch
      %456 = sbr.rel (0) target = $region185
    $region184: #{hyper_mp_block.1} parent=1 // pred_region
      %458 = dma.done [#allocation31], 16
    $region185: #{hyper_mp_block.1} parent=1 // pred_fallthru
      _
    // Predicated region
    $region186: #{hyper_mp_block.1} parent=1 // pred_check
      _
    $region187: #{hyper_mp_block.1} parent=1 // pred_check_branch
      %460 = sbr.rel (0) target = $region189
    $region188: #{hyper_mp_block.1} parent=1 // pred_region
      %462 = dma.done [#allocation31], 512
    $region189: #{hyper_mp_block.1} parent=1 // pred_fallthru
      _
    // Predicated region
    $region190: #{hyper_mp_block.1} parent=1 // pred_check
      _
    $region191: #{hyper_mp_block.1} parent=1 // pred_check_branch
      %464 = sbr.rel (0) target = $region193
    $region192: #{hyper_mp_block.1} parent=1 // pred_region
      %466 = dma.done [#allocation34], 16
    $region193: #{hyper_mp_block.1} parent=1 // pred_fallthru
      _
    // Predicated region
    $region194: #{hyper_mp_block.1} parent=1 // pred_check
      _
    $region195: #{hyper_mp_block.1} parent=1 // pred_check_branch
      %468 = sbr.rel (0) target = $region197
    $region196: #{hyper_mp_block.1} parent=1 // pred_region
      %470 = dma.done [#allocation34], 512
    $region197: #{hyper_mp_block.1} parent=1 // pred_fallthru
      _
    // Predicated region
    $region198: #{hyper_mp_block.1} parent=1 // pred_check
      _
    $region199: #{hyper_mp_block.1} parent=1 // pred_check_branch
      %472 = sbr.rel (0) target = $region201
    $region200: #{hyper_mp_block.1} parent=1 // pred_region
      %474 = dma.done [#allocation37], 16
    $region201: #{hyper_mp_block.1} parent=1 // pred_fallthru
      _
    // Predicated region
    $region202: #{hyper_mp_block.1} parent=1 // pred_check
      _
    $region203: #{hyper_mp_block.1} parent=1 // pred_check_branch
      %476 = sbr.rel (0) target = $region205
    $region204: #{hyper_mp_block.1} parent=1 // pred_region
      %478 = dma.done [#allocation37], 512
    $region205: #{hyper_mp_block.1} parent=1 // pred_fallthru
      _
    // Predicated region
    $region206: #{hyper_mp_block.1} parent=1 // pred_check
      _
    $region207: #{hyper_mp_block.1} parent=1 // pred_check_branch
      %480 = sbr.rel (0) target = $region209
    $region208: #{hyper_mp_block.1} parent=1 // pred_region
      %482 = dma.done [#allocation40], 512
    $region209: #{hyper_mp_block.1} parent=1 // pred_fallthru
      _
    // Predicated region
    $region210: #{hyper_mp_block.1} parent=1 // pred_check
      _
    $region211: #{hyper_mp_block.1} parent=1 // pred_check_branch
      %484 = sbr.rel (0) target = $region213
    $region212: #{hyper_mp_block.1} parent=1 // pred_region
      %486 = dma.done [#allocation40], 16
    $region213: #{hyper_mp_block.1} parent=1 // pred_fallthru
      _
    %v487 = vld [vmem:[#allocation3] sm:$0xff]
    %v488 = vld [vmem:[#allocation3 + $0x8] sm:$0xff]
    %vm489 = vcmask 261120
    %490 = vst.msk [vmem:[#allocation2] sm:$0xff] %vm489, %v487
    %491 = vst.msk [vmem:[#allocation2 + $0x8] sm:$0xff] %vm489, %v488
    %v492 = vld [vmem:[#allocation6] sm:$0xff]
    %493 = vst.msk [vmem:[#allocation2 + $0x10] sm:$0xff] %vm489, %v492
    %v494 = vld [vmem:[#allocation2] sm:$0xff]
    %v495 = vld [vmem:[#allocation2 + $0x8] sm:$0xff]
    %v496 = vld [vmem:[#allocation2 + $0x10] sm:$0xff]
    %v497 = vld [vmem:[#allocation11] sm:$0xff]
    %v498 = vld [vmem:[#allocation11 + $0x8] sm:$0xff]
    %v499 = vld [vmem:[#allocation11 + $0x10] sm:$0xff]
    %v500 = vld [vmem:[#allocation11 + $0x18] sm:$0xff]
    %v501 = vld [vmem:[#allocation12] sm:$0x1]
    %v502 = vld [vmem:[#allocation14] sm:$0xff]
    %v503 = vld [vmem:[#allocation14 + $0x8] sm:$0xff]
    %v504 = vld [vmem:[#allocation14 + $0x10] sm:$0xff]
    %v505 = vld [vmem:[#allocation14 + $0x18] sm:$0xff]
    %v506 = vld [vmem:[#allocation15] sm:$0x1]
    %v508 = vperm.slane %v501, 0
    %v511 = vsel %vm489, %v494, 0
    %v514 = vsel %vm489, %v495, 0
    %v517 = vsel %vm489, %v496, 0
    %519 = vmatpush.msra.mxu0 0.0
    %520 = vmatpush.msra.mxu0 0.0
    %521 = vmatpush.msra.mxu0 0.0
    %522 = vmatpush.msra.mxu0 0.0
    %523 = vmatpush.msra.mxu0 0.0
    %524 = vmatpush.msra.mxu0 0.0
    %525 = vmatpush.msra.mxu0 0.0
    %526 = vmatpush.msra.mxu0 0.0
    %527 = vmatpush.msra.mxu0 0.0
    %528 = vmatpush.msra.mxu0 0.0
    %529 = vmatpush.msra.mxu0 0.0
    %530 = vmatpush.msra.mxu0 0.0
    %531 = vmatpush.msra.mxu0 %v500
    %532 = vmatpush.msra.mxu0 %v499
    %533 = vmatpush.msra.mxu0 %v498
    %534 = vmatpush.msra.mxu0 %v497
    %535 = vmatmul.f32.gmra.mxu0 %v511
    %v536 = vpop.f32.mrf.mxu0
    %v537 = vadd.f32 %v508, %v536
    %538 = vmatmul.f32.gmra.mxu0 %v514
    %v539 = vpop.f32.mrf.mxu0
    %v540 = vadd.f32 %v508, %v539
    %541 = vmatmul.f32.gmra.mxu0 %v517
    %v542 = vpop.f32.mrf.mxu0
    %v543 = vadd.f32 %v508, %v542
    %544 = vdwg.mxu0
    %v545 = vmax.f32 %v537, 0.0
    %v546 = vmax.f32 %v540, 0.0
    %v547 = vmax.f32 %v543, 0.0
    %v549 = vperm.slane %v506, 0
    %v552 = vsel %vm489, %v545, 0
    %v555 = vsel %vm489, %v546, 0
    %v558 = vsel %vm489, %v547, 0
    %560 = vmatpush.msra.mxu0 0.0
    %561 = vmatpush.msra.mxu0 0.0
    %562 = vmatpush.msra.mxu0 0.0
    %563 = vmatpush.msra.mxu0 0.0
    %564 = vmatpush.msra.mxu0 0.0
    %565 = vmatpush.msra.mxu0 0.0
    %566 = vmatpush.msra.mxu0 0.0
    %567 = vmatpush.msra.mxu0 0.0
    %568 = vmatpush.msra.mxu0 0.0
    %569 = vmatpush.msra.mxu0 0.0
    %570 = vmatpush.msra.mxu0 0.0
    %571 = vmatpush.msra.mxu0 0.0
    %572 = vmatpush.msra.mxu0 %v505
    %573 = vmatpush.msra.mxu0 %v504
    %574 = vmatpush.msra.mxu0 %v503
    %575 = vmatpush.msra.mxu0 %v502
    %576 = vmatmul.f32.gmra.mxu0 %v552
    %v577 = vpop.f32.mrf.mxu0
    %v578 = vadd.f32 %v549, %v577
    %579 = vmatmul.f32.gmra.mxu0 %v555
    %v580 = vpop.f32.mrf.mxu0
    %v581 = vadd.f32 %v549, %v580
    %582 = vmatmul.f32.gmra.mxu0 %v558
    %v583 = vpop.f32.mrf.mxu0
    %v584 = vadd.f32 %v549, %v583
    %585 = vdwg.mxu0
    %v586 = vmax.f32 %v578, 0.0
    %v587 = vmax.f32 %v581, 0.0
    %v588 = vmax.f32 %v584, 0.0
    %v589 = vadd.f32 %v494, %v586
    %v590 = vadd.f32 %v495, %v587
    %v591 = vadd.f32 %v496, %v588
    %v592 = vmax.f32 %v589, 0.0
    %v593 = vmax.f32 %v590, 0.0
    %v594 = vmax.f32 %v591, 0.0
    %595 = vst.msk [vmem:[#allocation2] sm:$0xff] %vm489, %v592
    %596 = vst.msk [vmem:[#allocation2 + $0x8] sm:$0xff] %vm489, %v593
    %597 = vst.msk [vmem:[#allocation2 + $0x10] sm:$0xff] %vm489, %v594
    %v598 = vld [vmem:[#allocation8] sm:$0xff]
    %v599 = vld [vmem:[#allocation8 + $0x8] sm:$0xff]
    %v600 = vld [vmem:[%s9] sm:$0xff]
    %v601 = vld [vmem:[%s9 + $0x8] sm:$0xff]
    %v602 = vld [vmem:[#allocation2 + $0x10] sm:$0xff]
    %v603 = vld [vmem:[#allocation23] sm:$0xff]
    %v604 = vld [vmem:[#allocation23 + $0x8] sm:$0xff]
    %v605 = vld [vmem:[#allocation23 + $0x10] sm:$0xff]
    %v606 = vld [vmem:[#allocation23 + $0x18] sm:$0xff]
    %v607 = vld [vmem:[#allocation24] sm:$0x1]
    %v608 = vld [vmem:[%s33] sm:$0xff]
    %v609 = vld [vmem:[%s33 + $0x8] sm:$0xff]
    %v610 = vld [vmem:[%s33 + $0x10] sm:$0xff]
    %v611 = vld [vmem:[%s33 + $0x18] sm:$0xff]
    %v612 = vld [vmem:[#allocation26] sm:$0x1]
    %v613 = vld [vmem:[#allocation27] sm:$0xff]
    %v614 = vld [vmem:[#allocation27 + $0x8] sm:$0xff]
    %v615 = vld [vmem:[#allocation27 + $0x10] sm:$0xff]
    %v616 = vld [vmem:[#allocation27 + $0x18] sm:$0xff]
    %v617 = vld [vmem:[#allocation29] sm:$0xff]
    %v618 = vld [vmem:[#allocation29 + $0x8] sm:$0xff]
    %v619 = vld [vmem:[#allocation29 + $0x10] sm:$0xff]
    %v620 = vld [vmem:[#allocation29 + $0x18] sm:$0xff]
    %v621 = vld [vmem:[#allocation30] sm:$0x1]
    %v623 = vperm.slane %v607, 0
    %v626 = vsel %vm489, %v598, 0
    %v629 = vsel %vm489, %v599, 0
    %631 = vmatpush.msra.mxu0 0.0
    %632 = vmatpush.msra.mxu0 0.0
    %633 = vmatpush.msra.mxu0 0.0
    %634 = vmatpush.msra.mxu0 0.0
    %635 = vmatpush.msra.mxu0 0.0
    %636 = vmatpush.msra.mxu0 0.0
    %637 = vmatpush.msra.mxu0 0.0
    %638 = vmatpush.msra.mxu0 0.0
    %639 = vmatpush.msra.mxu0 0.0
    %640 = vmatpush.msra.mxu0 0.0
    %641 = vmatpush.msra.mxu0 0.0
    %642 = vmatpush.msra.mxu0 0.0
    %643 = vmatpush.msra.mxu0 %v606
    %644 = vmatpush.msra.mxu0 %v605
    %645 = vmatpush.msra.mxu0 %v604
    %646 = vmatpush.msra.mxu0 %v603
    %647 = vmatmul.f32.gmra.mxu0 %v626
    %v648 = vpop.f32.mrf.mxu0
    %v649 = vadd.f32 %v623, %v648
    %650 = vmatmul.f32.gmra.mxu0 %v629
    %v651 = vpop.f32.mrf.mxu0
    %v652 = vadd.f32 %v623, %v651
    %653 = vdwg.mxu0
    %v654 = vmax.f32 %v649, 0.0
    %v655 = vmax.f32 %v652, 0.0
    %vm656 = vcmask 64512
    %v658 = vsel %vm656, %v600, 0
    %v661 = vsel %vm656, %v601, 0
    %663 = vmatpush.msra.mxu0 0.0
    %664 = vmatpush.msra.mxu0 0.0
    %665 = vmatpush.msra.mxu0 0.0
    %666 = vmatpush.msra.mxu0 0.0
    %667 = vmatpush.msra.mxu0 0.0
    %668 = vmatpush.msra.mxu0 0.0
    %669 = vmatpush.msra.mxu0 0.0
    %670 = vmatpush.msra.mxu0 0.0
    %671 = vmatpush.msra.mxu0 0.0
    %672 = vmatpush.msra.mxu0 0.0
    %673 = vmatpush.msra.mxu0 0.0
    %674 = vmatpush.msra.mxu0 0.0
    %675 = vmatpush.msra.mxu0 0.0
    %676 = vmatpush.msra.mxu0 0.0
    %677 = vmatpush.msra.mxu0 0.0
    %678 = vmatpush.msra.mxu0 %v602
    %679 = vmatmul.f32.gmra.mxu0 %v658
    %v680 = vpop.f32.mrf.mxu0
    %v681 = vadd.f32 0.0, %v680
    %682 = vmatmul.f32.gmra.mxu0 %v661
    %v683 = vpop.f32.mrf.mxu0
    %v684 = vadd.f32 0.0, %v683
    %685 = vdwg.mxu0
    %v687 = vperm.slane %v612, 0
    %v690 = vsel %vm489, %v681, 0
    %v693 = vsel %vm489, %v684, 0
    %695 = vmatpush.msra.mxu0 0.0
    %696 = vmatpush.msra.mxu0 0.0
    %697 = vmatpush.msra.mxu0 0.0
    %698 = vmatpush.msra.mxu0 0.0
    %699 = vmatpush.msra.mxu0 0.0
    %700 = vmatpush.msra.mxu0 0.0
    %701 = vmatpush.msra.mxu0 0.0
    %702 = vmatpush.msra.mxu0 0.0
    %703 = vmatpush.msra.mxu0 0.0
    %704 = vmatpush.msra.mxu0 0.0
    %705 = vmatpush.msra.mxu0 0.0
    %706 = vmatpush.msra.mxu0 0.0
    %707 = vmatpush.msra.mxu0 %v611
    %708 = vmatpush.msra.mxu0 %v610
    %709 = vmatpush.msra.mxu0 %v609
    %710 = vmatpush.msra.mxu0 %v608
    %711 = vmatmul.f32.gmra.mxu0 %v690
    %v712 = vpop.f32.mrf.mxu0
    %v713 = vadd.f32 %v687, %v712
    %714 = vmatmul.f32.gmra.mxu0 %v693
    %v715 = vpop.f32.mrf.mxu0
    %v716 = vadd.f32 %v687, %v715
    %717 = vdwg.mxu0
    %v718 = vmax.f32 %v713, 0.0
    %v719 = vmax.f32 %v716, 0.0
    %v721 = vsel %vm489, %v718, 0
    %v724 = vsel %vm489, %v719, 0
    %726 = vmatpush.msra.mxu0 0.0
    %727 = vmatpush.msra.mxu0 0.0
    %728 = vmatpush.msra.mxu0 0.0
    %729 = vmatpush.msra.mxu0 0.0
    %730 = vmatpush.msra.mxu0 0.0
    %731 = vmatpush.msra.mxu0 0.0
    %732 = vmatpush.msra.mxu0 0.0
    %733 = vmatpush.msra.mxu0 0.0
    %734 = vmatpush.msra.mxu0 0.0
    %735 = vmatpush.msra.mxu0 0.0
    %736 = vmatpush.msra.mxu0 0.0
    %737 = vmatpush.msra.mxu0 0.0
    %738 = vmatpush.msra.mxu0 %v620
    %739 = vmatpush.msra.mxu0 %v619
    %740 = vmatpush.msra.mxu0 %v618
    %741 = vmatpush.msra.mxu0 %v617
    %742 = vmatmul.f32.gmra.mxu0 %v721
    %v743 = vpop.f32.mrf.mxu0
    %v744 = vadd.f32 0.0, %v743
    %745 = vmatmul.f32.gmra.mxu0 %v724
    %v746 = vpop.f32.mrf.mxu0
    %v747 = vadd.f32 0.0, %v746
    %748 = vdwg.mxu0
    %v750 = vsel %vm489, %v654, 0
    %v753 = vsel %vm489, %v655, 0
    %755 = vmatpush.msra.mxu0 0.0
    %756 = vmatpush.msra.mxu0 0.0
    %757 = vmatpush.msra.mxu0 0.0
    %758 = vmatpush.msra.mxu0 0.0
    %759 = vmatpush.msra.mxu0 0.0
    %760 = vmatpush.msra.mxu0 0.0
    %761 = vmatpush.msra.mxu0 0.0
    %762 = vmatpush.msra.mxu0 0.0
    %763 = vmatpush.msra.mxu0 0.0
    %764 = vmatpush.msra.mxu0 0.0
    %765 = vmatpush.msra.mxu0 0.0
    %766 = vmatpush.msra.mxu0 0.0
    %767 = vmatpush.msra.mxu0 %v616
    %768 = vmatpush.msra.mxu0 %v615
    %769 = vmatpush.msra.mxu0 %v614
    %770 = vmatpush.msra.mxu0 %v613
    %771 = vmatmul.f32.gmra.mxu0 %v750
    %v772 = vpop.f32.mrf.mxu0
    %v773 = vadd.f32 %v744, %v772
    %774 = vmatmul.f32.gmra.mxu0 %v753
    %v775 = vpop.f32.mrf.mxu0
    %v776 = vadd.f32 %v747, %v775
    %777 = vdwg.mxu0
    %v779 = vperm.slane %v621, 0
    %v781 = vadd.f32 %v773, %v779
    %v782 = vadd.f32 %v776, %v779
    %v783 = vmax.f32 %v781, 0.0
    %v784 = vmax.f32 %v782, 0.0
    %v785 = vld [vmem:[#allocation2] sm:$0xff]
    %v786 = vld [vmem:[#allocation2 + $0x8] sm:$0xff]
    %v787 = vadd.f32 %v785, %v783
    %v788 = vadd.f32 %v786, %v784
    %789 = vst.msk [vmem:[#allocation2] sm:$0xff] %vm489, %v787
    %790 = vst.msk [vmem:[#allocation2 + $0x8] sm:$0xff] %vm489, %v788
    %v791 = vld [vmem:[#allocation2] sm:$0xff]
    %v792 = vld [vmem:[#allocation2 + $0x8] sm:$0xff]
    %v793 = vld [vmem:[#allocation2 + $0x10] sm:$0xff]
    %v794 = vld [vmem:[#allocation17] sm:$0xff]
    %v795 = vld [vmem:[#allocation17 + $0x8] sm:$0xff]
    %v796 = vld [vmem:[#allocation17 + $0x10] sm:$0xff]
    %v797 = vld [vmem:[#allocation17 + $0x18] sm:$0xff]
    %v798 = vld [vmem:[#allocation18] sm:$0x1]
    %v799 = vld [vmem:[#allocation20] sm:$0xff]
    %v800 = vld [vmem:[#allocation20 + $0x8] sm:$0xff]
    %v801 = vld [vmem:[#allocation20 + $0x10] sm:$0xff]
    %v802 = vld [vmem:[#allocation20 + $0x18] sm:$0xff]
    %v803 = vld [vmem:[#allocation21] sm:$0x1]
    %v805 = vperm.slane %v798, 0
    %v808 = vsel %vm489, %v791, 0
    %v811 = vsel %vm489, %v792, 0
    %v814 = vsel %vm489, %v793, 0
    %816 = vmatpush.msra.mxu0 0.0
    %817 = vmatpush.msra.mxu0 0.0
    %818 = vmatpush.msra.mxu0 0.0
    %819 = vmatpush.msra.mxu0 0.0
    %820 = vmatpush.msra.mxu0 0.0
    %821 = vmatpush.msra.mxu0 0.0
    %822 = vmatpush.msra.mxu0 0.0
    %823 = vmatpush.msra.mxu0 0.0
    %824 = vmatpush.msra.mxu0 0.0
    %825 = vmatpush.msra.mxu0 0.0
    %826 = vmatpush.msra.mxu0 0.0
    %827 = vmatpush.msra.mxu0 0.0
    %828 = vmatpush.msra.mxu0 %v797
    %829 = vmatpush.msra.mxu0 %v796
    %830 = vmatpush.msra.mxu0 %v795
    %831 = vmatpush.msra.mxu0 %v794
    %832 = vmatmul.f32.gmra.mxu0 %v808
    %v833 = vpop.f32.mrf.mxu0
    %v834 = vadd.f32 %v805, %v833
    %835 = vmatmul.f32.gmra.mxu0 %v811
    %v836 = vpop.f32.mrf.mxu0
    %v837 = vadd.f32 %v805, %v836
    %838 = vmatmul.f32.gmra.mxu0 %v814
    %v839 = vpop.f32.mrf.mxu0
    %v840 = vadd.f32 %v805, %v839
    %841 = vdwg.mxu0
    %v842 = vmax.f32 %v834, 0.0
    %v843 = vmax.f32 %v837, 0.0
    %v844 = vmax.f32 %v840, 0.0
    %v846 = vperm.slane %v803, 0
    %v849 = vsel %vm489, %v842, 0
    %v852 = vsel %vm489, %v843, 0
    %v855 = vsel %vm489, %v844, 0
    %857 = vmatpush.msra.mxu0 0.0
    %858 = vmatpush.msra.mxu0 0.0
    %859 = vmatpush.msra.mxu0 0.0
    %860 = vmatpush.msra.mxu0 0.0
    %861 = vmatpush.msra.mxu0 0.0
    %862 = vmatpush.msra.mxu0 0.0
    %863 = vmatpush.msra.mxu0 0.0
    %864 = vmatpush.msra.mxu0 0.0
    %865 = vmatpush.msra.mxu0 0.0
    %866 = vmatpush.msra.mxu0 0.0
    %867 = vmatpush.msra.mxu0 0.0
    %868 = vmatpush.msra.mxu0 0.0
    %869 = vmatpush.msra.mxu0 %v802
    %870 = vmatpush.msra.mxu0 %v801
    %871 = vmatpush.msra.mxu0 %v800
    %872 = vmatpush.msra.mxu0 %v799
    %873 = vmatmul.f32.gmra.mxu0 %v849
    %v874 = vpop.f32.mrf.mxu0
    %v875 = vadd.f32 %v846, %v874
    %876 = vmatmul.f32.gmra.mxu0 %v852
    %v877 = vpop.f32.mrf.mxu0
    %v878 = vadd.f32 %v846, %v877
    %879 = vmatmul.f32.gmra.mxu0 %v855
    %v880 = vpop.f32.mrf.mxu0
    %v881 = vadd.f32 %v846, %v880
    %882 = vdwg.mxu0
    %v883 = vmax.f32 %v875, 0.0
    %v884 = vmax.f32 %v878, 0.0
    %v885 = vmax.f32 %v881, 0.0
    %v886 = vadd.f32 %v791, %v883
    %v887 = vadd.f32 %v792, %v884
    %v888 = vadd.f32 %v793, %v885
    %v889 = vmax.f32 %v886, 0.0
    %v890 = vmax.f32 %v887, 0.0
    %v891 = vmax.f32 %v888, 0.0
    %892 = vst.msk [vmem:[#allocation2] sm:$0xff] %vm489, %v889
    %893 = vst.msk [vmem:[#allocation2 + $0x8] sm:$0xff] %vm489, %v890
    %894 = vst.msk [vmem:[#allocation2 + $0x10] sm:$0xff] %vm489, %v891
    %v895 = vld [vmem:[#allocation2] sm:$0xff]
    %v896 = vld [vmem:[#allocation2 + $0x8] sm:$0xff]
    %897 = vst.msk [vmem:[#allocation42] sm:$0xff] %vm489, %v895
    %898 = vst.msk [vmem:[#allocation42 + $0x8] sm:$0xff] %vm489, %v896
    %v899 = vld [vmem:[%s7] sm:$0xff]
    %v900 = vld [vmem:[#allocation9] sm:$0xff]
    %v901 = vld [vmem:[#allocation32] sm:$0xff]
    %v902 = vld [vmem:[#allocation32 + $0x8] sm:$0xff]
    %v903 = vld [vmem:[#allocation32 + $0x10] sm:$0xff]
    %v904 = vld [vmem:[#allocation32 + $0x18] sm:$0xff]
    %v905 = vld [vmem:[#allocation33] sm:$0x1]
    %v906 = vld [vmem:[#allocation35] sm:$0xff]
    %v907 = vld [vmem:[#allocation35 + $0x8] sm:$0xff]
    %v908 = vld [vmem:[#allocation35 + $0x10] sm:$0xff]
    %v909 = vld [vmem:[#allocation35 + $0x18] sm:$0xff]
    %v910 = vld [vmem:[#allocation36] sm:$0x1]
    %v911 = vld [vmem:[#allocation38] sm:$0xff]
    %v912 = vld [vmem:[#allocation38 + $0x8] sm:$0xff]
    %v913 = vld [vmem:[#allocation38 + $0x10] sm:$0xff]
    %v914 = vld [vmem:[#allocation38 + $0x18] sm:$0xff]
    %v915 = vld [vmem:[#allocation39] sm:$0xff]
    %v916 = vld [vmem:[#allocation39 + $0x8] sm:$0xff]
    %v917 = vld [vmem:[#allocation39 + $0x10] sm:$0xff]
    %v918 = vld [vmem:[#allocation39 + $0x18] sm:$0xff]
    %v919 = vld [vmem:[#allocation41] sm:$0x1]
    %v921 = vperm.slane %v905, 0
    %v924 = vsel %vm489, %v899, 0
    %926 = vmatpush.msra.mxu0 0.0
    %927 = vmatpush.msra.mxu0 0.0
    %928 = vmatpush.msra.mxu0 0.0
    %929 = vmatpush.msra.mxu0 0.0
    %930 = vmatpush.msra.mxu0 0.0
    %931 = vmatpush.msra.mxu0 0.0
    %932 = vmatpush.msra.mxu0 0.0
    %933 = vmatpush.msra.mxu0 0.0
    %934 = vmatpush.msra.mxu0 0.0
    %935 = vmatpush.msra.mxu0 0.0
    %936 = vmatpush.msra.mxu0 0.0
    %937 = vmatpush.msra.mxu0 0.0
    %938 = vmatpush.msra.mxu0 %v904
    %939 = vmatpush.msra.mxu0 %v903
    %940 = vmatpush.msra.mxu0 %v902
    %941 = vmatpush.msra.mxu0 %v901
    %942 = vmatmul.f32.gmra.mxu0 %v924
    %v943 = vpop.f32.mrf.mxu0
    %v944 = vadd.f32 %v921, %v943
    %945 = vdwg.mxu0
    %v946 = vmax.f32 %v944, 0.0
    %vm947 = vcmask 130048
    %v949 = vsel %vm947, %v900, 0
    %951 = vmatpush.msra.mxu0 0.0
    %952 = vmatpush.msra.mxu0 0.0
    %953 = vmatpush.msra.mxu0 0.0
    %954 = vmatpush.msra.mxu0 0.0
    %955 = vmatpush.msra.mxu0 0.0
    %956 = vmatpush.msra.mxu0 0.0
    %957 = vmatpush.msra.mxu0 0.0
    %958 = vmatpush.msra.mxu0 0.0
    %959 = vmatpush.msra.mxu0 0.0
    %960 = vmatpush.msra.mxu0 0.0
    %961 = vmatpush.msra.mxu0 0.0
    %962 = vmatpush.msra.mxu0 0.0
    %963 = vmatpush.msra.mxu0 0.0
    %964 = vmatpush.msra.mxu0 0.0
    %965 = vmatpush.msra.mxu0 %v896
    %966 = vmatpush.msra.mxu0 %v895
    %967 = vmatmul.f32.gmra.mxu0 %v949
    %v968 = vpop.f32.mrf.mxu0
    %v969 = vadd.f32 0.0, %v968
    %970 = vdwg.mxu0
    %v972 = vperm.slane %v910, 0
    %v975 = vsel %vm489, %v969, 0
    %977 = vmatpush.msra.mxu0 0.0
    %978 = vmatpush.msra.mxu0 0.0
    %979 = vmatpush.msra.mxu0 0.0
    %980 = vmatpush.msra.mxu0 0.0
    %981 = vmatpush.msra.mxu0 0.0
    %982 = vmatpush.msra.mxu0 0.0
    %983 = vmatpush.msra.mxu0 0.0
    %984 = vmatpush.msra.mxu0 0.0
    %985 = vmatpush.msra.mxu0 0.0
    %986 = vmatpush.msra.mxu0 0.0
    %987 = vmatpush.msra.mxu0 0.0
    %988 = vmatpush.msra.mxu0 0.0
    %989 = vmatpush.msra.mxu0 %v909
    %990 = vmatpush.msra.mxu0 %v908
    %991 = vmatpush.msra.mxu0 %v907
    %992 = vmatpush.msra.mxu0 %v906
    %993 = vmatmul.f32.gmra.mxu0 %v975
    %v994 = vpop.f32.mrf.mxu0
    %v995 = vadd.f32 %v972, %v994
    %996 = vdwg.mxu0
    %v997 = vmax.f32 %v995, 0.0
    %v999 = vsel %vm489, %v997, 0
    %1001 = vmatpush.msra.mxu0 0.0
    %1002 = vmatpush.msra.mxu0 0.0
    %1003 = vmatpush.msra.mxu0 0.0
    %1004 = vmatpush.msra.mxu0 0.0
    %1005 = vmatpush.msra.mxu0 0.0
    %1006 = vmatpush.msra.mxu0 0.0
    %1007 = vmatpush.msra.mxu0 0.0
    %1008 = vmatpush.msra.mxu0 0.0
    %1009 = vmatpush.msra.mxu0 0.0
    %1010 = vmatpush.msra.mxu0 0.0
    %1011 = vmatpush.msra.mxu0 0.0
    %1012 = vmatpush.msra.mxu0 0.0
    %1013 = vmatpush.msra.mxu0 %v918
    %1014 = vmatpush.msra.mxu0 %v917
    %1015 = vmatpush.msra.mxu0 %v916
    %1016 = vmatpush.msra.mxu0 %v915
    %1017 = vmatmul.f32.gmra.mxu0 %v999
    %v1018 = vpop.f32.mrf.mxu0
    %v1019 = vadd.f32 0.0, %v1018
    %1020 = vdwg.mxu0
    %v1022 = vsel %vm489, %v946, 0
    %1024 = vmatpush.msra.mxu0 0.0
    %1025 = vmatpush.msra.mxu0 0.0
    %1026 = vmatpush.msra.mxu0 0.0
    %1027 = vmatpush.msra.mxu0 0.0
    %1028 = vmatpush.msra.mxu0 0.0
    %1029 = vmatpush.msra.mxu0 0.0
    %1030 = vmatpush.msra.mxu0 0.0
    %1031 = vmatpush.msra.mxu0 0.0
    %1032 = vmatpush.msra.mxu0 0.0
    %1033 = vmatpush.msra.mxu0 0.0
    %1034 = vmatpush.msra.mxu0 0.0
    %1035 = vmatpush.msra.mxu0 0.0
    %1036 = vmatpush.msra.mxu0 %v914
    %1037 = vmatpush.msra.mxu0 %v913
    %1038 = vmatpush.msra.mxu0 %v912
    %1039 = vmatpush.msra.mxu0 %v911
    %1040 = vmatmul.f32.gmra.mxu0 %v1022
    %v1041 = vpop.f32.mrf.mxu0
    %v1042 = vadd.f32 %v1019, %v1041
    %1043 = vdwg.mxu0
    %v1045 = vperm.slane %v919, 0
    %v1047 = vadd.f32 %v1042, %v1045
    %v1048 = vmax.f32 %v1047, 0.0
    %v1049 = vld [vmem:[#allocation2 + $0x10] sm:$0xff]
    %v1050 = vadd.f32 %v1049, %v1048
    %1051 = vst.msk [vmem:[#allocation43] sm:$0xff] %vm489, %v1050
    // Predicated region
    $region214: #{hyper_mp_block.1} parent=1 // pred_check
      _
    $region215: #{hyper_mp_block.1} parent=1 // pred_check_branch
      %1053 = sbr.rel (0) target = $region217
    $region216: #{hyper_mp_block.1} parent=1 // pred_region
      %1055 = vsyncadd [#allocation5], 0
      %s1056 = sshll.u32 [#allocation42], 4
      %s1057 = int_to_ptr.vmem [resolvable:$true] %s1056
      %s1058 = sshll.u32 %s57, 4
      %s1059 = int_to_ptr.hbm [resolvable:$true] %s1058
      %1064 = dma.vmem_to_hbm [thread:$0]  %s1057, 256, %s1059, [#allocation5], 128, 128, 8
    $region217: #{hyper_mp_block.1} parent=1 // pred_fallthru
      _
    // Predicated region
    $region218: #{hyper_mp_block.1} parent=1 // pred_check
      _
    $region219: #{hyper_mp_block.1} parent=1 // pred_check_branch
      %1066 = sbr.rel (0) target = $region221
    $region220: #{hyper_mp_block.1} parent=1 // pred_region
      %1068 = vsyncadd [#allocation44], 0
      %s1070 = sshll.u32 [#allocation43], 4
      %s1071 = int_to_ptr.vmem [resolvable:$true] %s1070
      %s1072 = sshll.u32 %s59, 4
      %s1073 = int_to_ptr.hbm [resolvable:$true] %s1072
      %1075 = dma.vmem_to_hbm [thread:$0]  %s1071, 128, %s1073, [#allocation44]
    $region221: #{hyper_mp_block.1} parent=1 // pred_fallthru
      _
    // Predicated region
    $region222: #{hyper_mp_block.1} parent=1 // pred_check
      _
    $region223: #{hyper_mp_block.1} parent=1 // pred_check_branch
      %1077 = sbr.rel (0) target = $region225
    $region224: #{hyper_mp_block.1} parent=1 // pred_region
      %1079 = dma.done [#allocation5], 256
    $region225: #{hyper_mp_block.1} parent=1 // pred_fallthru
      _
    // Predicated region
    $region226: #{hyper_mp_block.1} parent=1 // pred_check
      _
    $region227: #{hyper_mp_block.1} parent=1 // pred_check_branch
      %1081 = sbr.rel (0) target = $region229
    $region228: #{hyper_mp_block.1} parent=1 // pred_region
      %1083 = dma.done [#allocation44], 128
    $region229: #{hyper_mp_block.1} parent=1 // pred_fallthru
      _
    %1084 = vsyncpa [#allocation4], 1
    %1085 = vsyncpa [#allocation7], 1
    %1086 = vsyncpa [#allocation10], 1
    %1087 = vsyncpa [#allocation13], 1
    %1088 = vsyncpa [#allocation16], 1
    %1089 = vsyncpa [#allocation19], 1
    %1090 = vsyncpa [#allocation22], 1
    %1091 = vsyncpa [#allocation25], 1
    %1092 = vsyncpa [#allocation28], 1
    %1093 = vsyncpa [#allocation31], 1
    %1094 = vsyncpa [#allocation34], 1
    %1095 = vsyncpa [#allocation37], 1
    %1096 = vsyncpa [#allocation40], 1
    %1097 = vsyncpa [#allocation5], 1
    %1098 = vsyncpa [#allocation44], 1

</llo_original>
